<compile_context>
chip_gen: v7x
topology: tpu7x:2x2x1
jax: 0.10.0
libtpu: 0.0.40
codegen_flags: <defaults>
</compile_context>

<pallas_src>
import functools

import numpy as np
import jax
import jax.numpy as jnp
from jax.experimental import pallas as pl
from jax.experimental.pallas import tpu as pltpu

EMBED_SIZE = 64          # user emb = 32+4+2+8+18 = 64 ; item emb = 32+8+8+8+8 = 64
GCN_LAYERS = 2           # args.gcn_layers


# ----------------------------- Pallas kernel -------------------------------

def _fused_gcn_kernel(users_ref, items_ref,               # SMEM (scalar prefetch)
                      graph_ref, feat_ref, w_ref, b_ref,  # VMEM inputs
                      out_ref,                            # VMEM output (B, 128)
                      layers_ref, gather_ref,             # VMEM scratch
                      *, num_user, num_layers, batch):
    """Whole GCN forward, VMEM-resident.

    layers_ref : (L+1, N, D)  — features of layer 0..L
    gather_ref : (L+1, 2B, D) — gathered [user rows ; item rows] per layer
    """
    g = graph_ref[...]                       # (N, N) f32
    f = feat_ref[...]                        # (N, D) f32
    d = f.shape[1]

    # --- GCN propagation: features_{l+1} = graph @ features_l ---------------
    layers_ref[0, :, :] = f
    for l in range(num_layers):
        f = jnp.dot(g, f, preferred_element_type=jnp.float32)
        layers_ref[l + 1, :, :] = f

    # --- gather queried user / item rows via SMEM scalar indices ------------
    # (replaces final_emb[users] / final_emb[items] XLA gathers)
    for l in range(num_layers + 1):
        for bi in range(batch):
            u_idx = users_ref[bi]
            i_idx = num_user + items_ref[bi]
            gather_ref[l, pl.ds(bi, 1), :] = layers_ref[l, pl.ds(u_idx, 1), :]
            gather_ref[l, pl.ds(batch + bi, 1), :] = layers_ref[l, pl.ds(i_idx, 1), :]

    # --- fused transForm(Linear) on stacked [U; I] + row-wise dot ------------
    # transForm(concat_l x_l) = sum_l x_l @ W_l + b   (W split row-wise, so the
    # 192-wide concat is never materialized and every tile stays 64/128-lane).
    trans = jnp.broadcast_to(b_ref[...], (2 * batch, d)).astype(jnp.float32)
    for l in range(num_layers + 1):
        trans = trans + jnp.dot(gather_ref[l],
                                w_ref[l * d:(l + 1) * d, :],
                                preferred_element_type=jnp.float32)

    u_t = trans[:batch, :]                   # (B, D)
    i_t = trans[batch:, :]                   # (B, D)
    pred = jnp.sum(u_t * i_t, axis=1, keepdims=True)          # (B, 1)

    # lane-dense store: broadcast across 128 lanes -> one unmasked vst.
    out_ref[...] = jnp.broadcast_to(pred, out_ref.shape)


def gcn_forward_pallas(users, items, graph, features, w, b,
                       *, num_user, num_layers):
    """Fused forward: prediction (B,) = rowsum(transForm(U) * transForm(I))."""
    n, d = features.shape
    batch = int(users.shape[0])
    d_total = d * (num_layers + 1)
    assert graph.shape == (n, n)
    assert w.shape == (d_total, d) and b.shape == (d,)
    assert n % 8 == 0, "node count must be sublane (8) aligned"

    kernel = functools.partial(_fused_gcn_kernel,
                               num_user=num_user,
                               num_layers=num_layers,
                               batch=batch)

    out = pl.pallas_call(
        kernel,
        out_shape=jax.ShapeDtypeStruct((batch, 128), jnp.float32),
        grid_spec=pltpu.PrefetchScalarGridSpec(
            num_scalar_prefetch=2,                 # users, items -> SMEM
            grid=(1,),
            in_specs=[
                pl.BlockSpec((n, n), lambda i, u, it: (0, 0)),        # graph
                pl.BlockSpec((n, d), lambda i, u, it: (0, 0)),        # features
                pl.BlockSpec((d_total, d), lambda i, u, it: (0, 0)),  # transForm W
                pl.BlockSpec((1, d), lambda i, u, it: (0, 0)),        # transForm b
            ],
            out_specs=pl.BlockSpec((batch, 128), lambda i, u, it: (0, 0)),
            scratch_shapes=[
                pltpu.VMEM((num_layers + 1, n, d), jnp.float32),         # layers
                pltpu.VMEM((num_layers + 1, 2 * batch, d), jnp.float32),  # gathered
            ],
        ),
        compiler_params=pltpu.CompilerParams(
            dimension_semantics=("arbitrary",)),
    )(users.astype(jnp.int32), items.astype(jnp.int32),
      graph.astype(jnp.float32), features.astype(jnp.float32),
      w.astype(jnp.float32), b.reshape(1, d).astype(jnp.float32))

    return out[:, 0]


# ------------------------------ model glue ---------------------------------

def build_params(key, vocab_sizes):
    """Deterministic stand-in for nn.Embedding / nn.Linear initialization."""
    ks = jax.random.split(key, 12)
    p = {}
    p["user_id"] = jax.random.normal(ks[0], (vocab_sizes["user_id"], 32), jnp.float32)
    p["user_age"] = jax.random.normal(ks[1], (vocab_sizes["user_age"], 4), jnp.float32)
    p["user_gender"] = jax.random.normal(ks[2], (vocab_sizes["user_gender"], 2), jnp.float32)
    p["user_occupation"] = jax.random.normal(ks[3], (vocab_sizes["user_occupation"], 8), jnp.float32)
    p["user_location"] = jax.random.normal(ks[4], (vocab_sizes["user_location"], 18), jnp.float32)
    p["item_id"] = jax.random.normal(ks[5], (vocab_sizes["item_id"], 32), jnp.float32)
    p["item_type"] = jax.random.normal(ks[6], (vocab_sizes["item_type"], 8), jnp.float32)
    p["item_temperature"] = jax.random.normal(ks[7], (vocab_sizes["item_temperature"], 8), jnp.float32)
    p["item_humidity"] = jax.random.normal(ks[8], (vocab_sizes["item_humidity"], 8), jnp.float32)
    p["item_windSpeed"] = jax.random.normal(ks[9], (vocab_sizes["item_windSpeed"], 8), jnp.float32)
    d_total = EMBED_SIZE * (GCN_LAYERS + 1)
    bound = 1.0 / np.sqrt(d_total)
    p["transForm_w"] = jax.random.uniform(ks[10], (d_total, EMBED_SIZE),
                                          jnp.float32, -bound, bound)
    p["transForm_b"] = jax.random.uniform(ks[11], (EMBED_SIZE,),
                                          jnp.float32, -bound, bound)
    # NOTE: GCN_Layer.W1/W2 exist in the reference __init__ but are never used
    # in its forward (forward is just sparse.mm), so they are omitted here.
    return p


def get_features(p, user_feat, item_feat):
    """getFeature(): embedding lookups + concatenation (plain-JAX glue)."""
    user_emb = jnp.concatenate([
        jnp.take(p["user_id"], user_feat["id"], axis=0),
        jnp.take(p["user_age"], user_feat["age"], axis=0),
        jnp.take(p["user_gender"], user_feat["gender"], axis=0),
        jnp.take(p["user_occupation"], user_feat["occupation"], axis=0),
        jnp.take(p["user_location"], user_feat["location"], axis=0),
    ], axis=1)
    item_emb = jnp.concatenate([
        jnp.take(p["item_id"], item_feat["id"], axis=0),
        jnp.take(p["item_type"], item_feat["type"], axis=0),
        jnp.take(p["item_temperature"], item_feat["temperature"], axis=0),
        jnp.take(p["item_humidity"], item_feat["humidity"], axis=0),
        jnp.take(p["item_windSpeed"], item_feat["windSpeed"], axis=0),
    ], axis=1)
    return jnp.concatenate([user_emb, item_emb], axis=0)  # (N, 64)


def build_graph(rating_mat):
    """buildGraph(): symmetric bipartite adjacency + D^-1/2 A D^-1/2 norm,
    built densely in numpy (host-side glue)."""
    nu, ni = rating_mat.shape
    n = nu + ni
    a = np.zeros((n, n), dtype=np.float32)
    a[:nu, nu:] = rating_mat
    a[nu:, :nu] = rating_mat.T
    row_sum = a.sum(axis=1)
    col_sum = a.sum(axis=0)
    r = 1.0 / (np.sqrt(row_sum) + 1e-08)
    c = 1.0 / (np.sqrt(col_sum) + 1e-08)
    return jnp.asarray(r[:, None] * a * c[None, :], dtype=jnp.float32)


def gcn_forward(p, graph, user_feat, item_feat, num_user, users, items):
    features = get_features(p, user_feat, item_feat)          # (N, 64)
    # Everything downstream (propagation, concat, gather, transForm, dot)
    # happens inside the single fused Pallas kernel.
    return gcn_forward_pallas(users, items, graph, features,
                              p["transForm_w"], p["transForm_b"],
                              num_user=num_user, num_layers=GCN_LAYERS)


def gcn_forward_reference(p, graph, user_feat, item_feat, num_user, users, items):
    """Pure-JAX reference of the PyTorch forward (for a self-check)."""
    hi = jax.lax.Precision.HIGHEST
    f = get_features(p, user_feat, item_feat)
    final = f
    for _ in range(GCN_LAYERS):
        f = jnp.dot(graph, f, precision=hi)
        final = jnp.concatenate([final, f], axis=1)
    u = final[:num_user][users]
    it = final[num_user:][items]
    u = jnp.dot(u, p["transForm_w"], precision=hi) + p["transForm_b"]
    it = jnp.dot(it, p["transForm_w"], precision=hi) + p["transForm_b"]
    return jnp.sum(u * it, axis=1)


# --------------------------------- main -------------------------------------

if __name__ == "__main__":
    NUM_USER, NUM_ITEM = 48, 80          # N = 128 nodes
    B = 8                                # number of (user, item) query pairs

    key = jax.random.PRNGKey(0)
    k_feat, k_rate, k_param, k_query = jax.random.split(key, 4)

    # synthetic categorical feature tables
    vocab = dict(user_id=NUM_USER, user_age=8, user_gender=2,
                 user_occupation=10, user_location=12,
                 item_id=NUM_ITEM, item_type=6, item_temperature=5,
                 item_humidity=5, item_windSpeed=5)
    kf = jax.random.split(k_feat, 9)
    user_feat = {
        "id": jnp.arange(NUM_USER, dtype=jnp.int32),
        "age": jax.random.randint(kf[0], (NUM_USER,), 0, vocab["user_age"]),
        "gender": jax.random.randint(kf[1], (NUM_USER,), 0, vocab["user_gender"]),
        "occupation": jax.random.randint(kf[2], (NUM_USER,), 0, vocab["user_occupation"]),
        "location": jax.random.randint(kf[3], (NUM_USER,), 0, vocab["user_location"]),
    }
    item_feat = {
        "id": jnp.arange(NUM_ITEM, dtype=jnp.int32),
        "type": jax.random.randint(kf[4], (NUM_ITEM,), 0, vocab["item_type"]),
        "temperature": jax.random.randint(kf[5], (NUM_ITEM,), 0, vocab["item_temperature"]),
        "humidity": jax.random.randint(kf[6], (NUM_ITEM,), 0, vocab["item_humidity"]),
        "windSpeed": jax.random.randint(kf[7], (NUM_ITEM,), 0, vocab["item_windSpeed"]),
    }

    # synthetic sparse rating matrix (values 0..5); guarantee non-empty rows/cols
    rating = np.asarray(
        jax.random.randint(k_rate, (NUM_USER, NUM_ITEM), 0, 6), dtype=np.float32)
    rating *= (np.asarray(
        jax.random.uniform(jax.random.fold_in(k_rate, 1),
                           (NUM_USER, NUM_ITEM))) < 0.15)
    for u in range(NUM_USER):
        rating[u, u % NUM_ITEM] = max(rating[u, u % NUM_ITEM], 1.0)
    for i in range(NUM_ITEM):
        rating[i % NUM_USER, i] = max(rating[i % NUM_USER, i], 1.0)

    graph = build_graph(rating)                    # (128, 128) normalized adj
    params = build_params(k_param, vocab)

    kq1, kq2 = jax.random.split(k_query)
    users = jax.random.randint(kq1, (B,), 0, NUM_USER)
    items = jax.random.randint(kq2, (B,), 0, NUM_ITEM)

    pred = gcn_forward(params, graph, user_feat, item_feat, NUM_USER, users, items)
    jax.block_until_ready(pred)
    assert pred.shape == (B,) and pred.dtype == jnp.float32

    # correctness self-check against the pure-JAX reference
    ref = np.asarray(gcn_forward_reference(params, graph, user_feat, item_feat,
                                           NUM_USER, users, items))
    got = np.asarray(pred)
    err = np.max(np.abs(got - ref))
    assert err <= 1e-2 * (1.0 + np.max(np.abs(ref))), f"mismatch: {err}"

    print("KERNEL_OK")
</pallas_src>

<mosaic_0001>
module attributes {stable_mosaic.version = 11 : i64} {
  func.func @_fused_gcn_kernel(%arg0: i32, %arg1: memref<8xi32, #tpu.memory_space<smem>>, %arg2: memref<8xi32, #tpu.memory_space<smem>>, %arg3: memref<128x128xf32, #tpu.memory_space<vmem>>, %arg4: memref<128x64xf32, #tpu.memory_space<vmem>>, %arg5: memref<192x64xf32, #tpu.memory_space<vmem>>, %arg6: memref<1x64xf32, #tpu.memory_space<vmem>>, %arg7: memref<8x128xf32, #tpu.memory_space<vmem>>, %arg8: memref<3x128x64xf32, #tpu.memory_space<vmem>>, %arg9: memref<3x16x64xf32, #tpu.memory_space<vmem>>) attributes {dimension_semantics = [#tpu.dimension_semantics<arbitrary>], iteration_bounds = array<i64: 1>, scalar_prefetch = 2 : i64, scratch_operands = 2 : i64, tpu.core_type = #tpu.core_type<tc>, window_params = [{pipeline_mode = #tpu.pipeline_mode<synchronous>, transform_indices = @transform_0, window_bounds = array<i64: 128, 128>}, {pipeline_mode = #tpu.pipeline_mode<synchronous>, transform_indices = @transform_1, window_bounds = array<i64: 128, 64>}, {pipeline_mode = #tpu.pipeline_mode<synchronous>, transform_indices = @transform_2, window_bounds = array<i64: 192, 64>}, {pipeline_mode = #tpu.pipeline_mode<synchronous>, transform_indices = @transform_3, window_bounds = array<i64: 1, 64>}, {pipeline_mode = #tpu.pipeline_mode<synchronous>, transform_indices = @transform_4, window_bounds = array<i64: 8, 128>}]} {
    %c0 = arith.constant 0 : index
    %c0_0 = arith.constant 0 : index
    %0 = vector.load %arg3[%c0, %c0_0] : memref<128x128xf32, #tpu.memory_space<vmem>>, vector<128x128xf32>
    %c0_1 = arith.constant 0 : index
    %c0_2 = arith.constant 0 : index
    %1 = vector.load %arg4[%c0_1, %c0_2] : memref<128x64xf32, #tpu.memory_space<vmem>>, vector<128x64xf32>
    %c0_3 = arith.constant 0 : index
    %c0_4 = arith.constant 0 : index
    %c0_5 = arith.constant 0 : index
    %2 = vector.load %arg8[%c0_3, %c0_4, %c0_5] : memref<3x128x64xf32, #tpu.memory_space<vmem>>, vector<1x128x64xf32>
    %3 = vector.shape_cast %2 : vector<1x128x64xf32> to vector<128x64xf32>
    %4 = vector.shape_cast %1 : vector<128x64xf32> to vector<1x128x64xf32>
    tpu.vector_store %arg8[%c0_3, %c0_4, %c0_5], %4 {strides = array<i32>} : memref<3x128x64xf32, #tpu.memory_space<vmem>>, vector<1x128x64xf32>,
    %cst = arith.constant dense<0.000000e+00> : vector<128x64xf32>
    %5 = tpu.matmul %0, %1, %cst {dimension_numbers = #tpu.dot_dimension_numbers<[1], [0], [0], [1], [0, 0, 1, 1], [], []>} : vector<128x128xf32>, vector<128x64xf32>, vector<128x64xf32> -> vector<128x64xf32>
    %c1 = arith.constant 1 : index
    %c0_6 = arith.constant 0 : index
    %c0_7 = arith.constant 0 : index
    %6 = vector.load %arg8[%c1, %c0_6, %c0_7] : memref<3x128x64xf32, #tpu.memory_space<vmem>>, vector<1x128x64xf32>
    %7 = vector.shape_cast %6 : vector<1x128x64xf32> to vector<128x64xf32>
    %8 = vector.shape_cast %5 : vector<128x64xf32> to vector<1x128x64xf32>
    tpu.vector_store %arg8[%c1, %c0_6, %c0_7], %8 {strides = array<i32>} : memref<3x128x64xf32, #tpu.memory_space<vmem>>, vector<1x128x64xf32>,
    %cst_8 = arith.constant dense<0.000000e+00> : vector<128x64xf32>
    %9 = tpu.matmul %0, %5, %cst_8 {dimension_numbers = #tpu.dot_dimension_numbers<[1], [0], [0], [1], [0, 0, 1, 1], [], []>} : vector<128x128xf32>, vector<128x64xf32>, vector<128x64xf32> -> vector<128x64xf32>
    %c2 = arith.constant 2 : index
    %c0_9 = arith.constant 0 : index
    %c0_10 = arith.constant 0 : index
    %10 = vector.load %arg8[%c2, %c0_9, %c0_10] : memref<3x128x64xf32, #tpu.memory_space<vmem>>, vector<1x128x64xf32>
    %11 = vector.shape_cast %10 : vector<1x128x64xf32> to vector<128x64xf32>
    %12 = vector.shape_cast %9 : vector<128x64xf32> to vector<1x128x64xf32>
    tpu.vector_store %arg8[%c2, %c0_9, %c0_10], %12 {strides = array<i32>} : memref<3x128x64xf32, #tpu.memory_space<vmem>>, vector<1x128x64xf32>,
    %c0_11 = arith.constant 0 : index
    %13 = memref.load %arg1[%c0_11] : memref<8xi32, #tpu.memory_space<smem>>
    %c0_12 = arith.constant 0 : index
    %14 = memref.load %arg2[%c0_12] : memref<8xi32, #tpu.memory_space<smem>>
    %c48_i32 = arith.constant 48 : i32
    %15 = arith.addi %c48_i32, %14 : i32
    %c0_13 = arith.constant 0 : index
    %16 = arith.index_cast %13 : i32 to index
    %c0_14 = arith.constant 0 : index
    %17 = vector.load %arg8[%c0_13, %16, %c0_14] : memref<3x128x64xf32, #tpu.memory_space<vmem>>, vector<1x1x64xf32>
    %18 = vector.shape_cast %17 : vector<1x1x64xf32> to vector<1x64xf32>
    %c0_15 = arith.constant 0 : index
    %c0_16 = arith.constant 0 : index
    %c0_17 = arith.constant 0 : index
    %19 = vector.load %arg9[%c0_15, %c0_16, %c0_17] : memref<3x16x64xf32, #tpu.memory_space<vmem>>, vector<1x1x64xf32>
    %20 = vector.shape_cast %19 : vector<1x1x64xf32> to vector<1x64xf32>
    %21 = vector.shape_cast %18 : vector<1x64xf32> to vector<1x1x64xf32>
    tpu.vector_store %arg9[%c0_15, %c0_16, %c0_17], %21 {strides = array<i32>} : memref<3x16x64xf32, #tpu.memory_space<vmem>>, vector<1x1x64xf32>,
    %c0_18 = arith.constant 0 : index
    %22 = arith.index_cast %15 : i32 to index
    %c0_19 = arith.constant 0 : index
    %23 = vector.load %arg8[%c0_18, %22, %c0_19] : memref<3x128x64xf32, #tpu.memory_space<vmem>>, vector<1x1x64xf32>
    %24 = vector.shape_cast %23 : vector<1x1x64xf32> to vector<1x64xf32>
    %c0_20 = arith.constant 0 : index
    %c8 = arith.constant 8 : index
    %c0_21 = arith.constant 0 : index
    %25 = vector.load %arg9[%c0_20, %c8, %c0_21] : memref<3x16x64xf32, #tpu.memory_space<vmem>>, vector<1x1x64xf32>
    %26 = vector.shape_cast %25 : vector<1x1x64xf32> to vector<1x64xf32>
    %27 = vector.shape_cast %24 : vector<1x64xf32> to vector<1x1x64xf32>
    tpu.vector_store %arg9[%c0_20, %c8, %c0_21], %27 {strides = array<i32>} : memref<3x16x64xf32, #tpu.memory_space<vmem>>, vector<1x1x64xf32>,
    %c1_22 = arith.constant 1 : index
    %28 = memref.load %arg1[%c1_22] : memref<8xi32, #tpu.memory_space<smem>>
    %c1_23 = arith.constant 1 : index
    %29 = memref.load %arg2[%c1_23] : memref<8xi32, #tpu.memory_space<smem>>
    %c48_i32_24 = arith.constant 48 : i32
    %30 = arith.addi %c48_i32_24, %29 : i32
    %c0_25 = arith.constant 0 : index
    %31 = arith.index_cast %28 : i32 to index
    %c0_26 = arith.constant 0 : index
    %32 = vector.load %arg8[%c0_25, %31, %c0_26] : memref<3x128x64xf32, #tpu.memory_space<vmem>>, vector<1x1x64xf32>
    %33 = vector.shape_cast %32 : vector<1x1x64xf32> to vector<1x64xf32>
    %c0_27 = arith.constant 0 : index
    %c1_28 = arith.constant 1 : index
    %c0_29 = arith.constant 0 : index
    %34 = vector.load %arg9[%c0_27, %c1_28, %c0_29] : memref<3x16x64xf32, #tpu.memory_space<vmem>>, vector<1x1x64xf32>
    %35 = vector.shape_cast %34 : vector<1x1x64xf32> to vector<1x64xf32>
    %36 = vector.shape_cast %33 : vector<1x64xf32> to vector<1x1x64xf32>
    tpu.vector_store %arg9[%c0_27, %c1_28, %c0_29], %36 {strides = array<i32>} : memref<3x16x64xf32, #tpu.memory_space<vmem>>, vector<1x1x64xf32>,
    %c0_30 = arith.constant 0 : index
    %37 = arith.index_cast %30 : i32 to index
    %c0_31 = arith.constant 0 : index
    %38 = vector.load %arg8[%c0_30, %37, %c0_31] : memref<3x128x64xf32, #tpu.memory_space<vmem>>, vector<1x1x64xf32>
    %39 = vector.shape_cast %38 : vector<1x1x64xf32> to vector<1x64xf32>
    %c0_32 = arith.constant 0 : index
    %c9 = arith.constant 9 : index
    %c0_33 = arith.constant 0 : index
    %40 = vector.load %arg9[%c0_32, %c9, %c0_33] : memref<3x16x64xf32, #tpu.memory_space<vmem>>, vector<1x1x64xf32>
    %41 = vector.shape_cast %40 : vector<1x1x64xf32> to vector<1x64xf32>
    %42 = vector.shape_cast %39 : vector<1x64xf32> to vector<1x1x64xf32>
    tpu.vector_store %arg9[%c0_32, %c9, %c0_33], %42 {strides = array<i32>} : memref<3x16x64xf32, #tpu.memory_space<vmem>>, vector<1x1x64xf32>,
    %c2_34 = arith.constant 2 : index
    %43 = memref.load %arg1[%c2_34] : memref<8xi32, #tpu.memory_space<smem>>
    %c2_35 = arith.constant 2 : index
    %44 = memref.load %arg2[%c2_35] : memref<8xi32, #tpu.memory_space<smem>>
    %c48_i32_36 = arith.constant 48 : i32
    %45 = arith.addi %c48_i32_36, %44 : i32
    %c0_37 = arith.constant 0 : index
    %46 = arith.index_cast %43 : i32 to index
    %c0_38 = arith.constant 0 : index
    %47 = vector.load %arg8[%c0_37, %46, %c0_38] : memref<3x128x64xf32, #tpu.memory_space<vmem>>, vector<1x1x64xf32>
    %48 = vector.shape_cast %47 : vector<1x1x64xf32> to vector<1x64xf32>
    %c0_39 = arith.constant 0 : index
    %c2_40 = arith.constant 2 : index
    %c0_41 = arith.constant 0 : index
    %49 = vector.load %arg9[%c0_39, %c2_40, %c0_41] : memref<3x16x64xf32, #tpu.memory_space<vmem>>, vector<1x1x64xf32>
    %50 = vector.shape_cast %49 : vector<1x1x64xf32> to vector<1x64xf32>
    %51 = vector.shape_cast %48 : vector<1x64xf32> to vector<1x1x64xf32>
    tpu.vector_store %arg9[%c0_39, %c2_40, %c0_41], %51 {strides = array<i32>} : memref<3x16x64xf32, #tpu.memory_space<vmem>>, vector<1x1x64xf32>,
    %c0_42 = arith.constant 0 : index
    %52 = arith.index_cast %45 : i32 to index
    %c0_43 = arith.constant 0 : index
    %53 = vector.load %arg8[%c0_42, %52, %c0_43] : memref<3x128x64xf32, #tpu.memory_space<vmem>>, vector<1x1x64xf32>
    %54 = vector.shape_cast %53 : vector<1x1x64xf32> to vector<1x64xf32>
    %c0_44 = arith.constant 0 : index
    %c10 = arith.constant 10 : index
    %c0_45 = arith.constant 0 : index
    %55 = vector.load %arg9[%c0_44, %c10, %c0_45] : memref<3x16x64xf32, #tpu.memory_space<vmem>>, vector<1x1x64xf32>
    %56 = vector.shape_cast %55 : vector<1x1x64xf32> to vector<1x64xf32>
    %57 = vector.shape_cast %54 : vector<1x64xf32> to vector<1x1x64xf32>
    tpu.vector_store %arg9[%c0_44, %c10, %c0_45], %57 {strides = array<i32>} : memref<3x16x64xf32, #tpu.memory_space<vmem>>, vector<1x1x64xf32>,
    %c3 = arith.constant 3 : index
    %58 = memref.load %arg1[%c3] : memref<8xi32, #tpu.memory_space<smem>>
    %c3_46 = arith.constant 3 : index
    %59 = memref.load %arg2[%c3_46] : memref<8xi32, #tpu.memory_space<smem>>
    %c48_i32_47 = arith.constant 48 : i32
    %60 = arith.addi %c48_i32_47, %59 : i32
    %c0_48 = arith.constant 0 : index
    %61 = arith.index_cast %58 : i32 to index
    %c0_49 = arith.constant 0 : index
    %62 = vector.load %arg8[%c0_48, %61, %c0_49] : memref<3x128x64xf32, #tpu.memory_space<vmem>>, vector<1x1x64xf32>
    %63 = vector.shape_cast %62 : vector<1x1x64xf32> to vector<1x64xf32>
    %c0_50 = arith.constant 0 : index
    %c3_51 = arith.constant 3 : index
    %c0_52 = arith.constant 0 : index
    %64 = vector.load %arg9[%c0_50, %c3_51, %c0_52] : memref<3x16x64xf32, #tpu.memory_space<vmem>>, vector<1x1x64xf32>
    %65 = vector.shape_cast %64 : vector<1x1x64xf32> to vector<1x64xf32>
    %66 = vector.shape_cast %63 : vector<1x64xf32> to vector<1x1x64xf32>
    tpu.vector_store %arg9[%c0_50, %c3_51, %c0_52], %66 {strides = array<i32>} : memref<3x16x64xf32, #tpu.memory_space<vmem>>, vector<1x1x64xf32>,
    %c0_53 = arith.constant 0 : index
    %67 = arith.index_cast %60 : i32 to index
    %c0_54 = arith.constant 0 : index
    %68 = vector.load %arg8[%c0_53, %67, %c0_54] : memref<3x128x64xf32, #tpu.memory_space<vmem>>, vector<1x1x64xf32>
    %69 = vector.shape_cast %68 : vector<1x1x64xf32> to vector<1x64xf32>
    %c0_55 = arith.constant 0 : index
    %c11 = arith.constant 11 : index
    %c0_56 = arith.constant 0 : index
    %70 = vector.load %arg9[%c0_55, %c11, %c0_56] : memref<3x16x64xf32, #tpu.memory_space<vmem>>, vector<1x1x64xf32>
    %71 = vector.shape_cast %70 : vector<1x1x64xf32> to vector<1x64xf32>
    %72 = vector.shape_cast %69 : vector<1x64xf32> to vector<1x1x64xf32>
    tpu.vector_store %arg9[%c0_55, %c11, %c0_56], %72 {strides = array<i32>} : memref<3x16x64xf32, #tpu.memory_space<vmem>>, vector<1x1x64xf32>,
    %c4 = arith.constant 4 : index
    %73 = memref.load %arg1[%c4] : memref<8xi32, #tpu.memory_space<smem>>
    %c4_57 = arith.constant 4 : index
    %74 = memref.load %arg2[%c4_57] : memref<8xi32, #tpu.memory_space<smem>>
    %c48_i32_58 = arith.constant 48 : i32
    %75 = arith.addi %c48_i32_58, %74 : i32
    %c0_59 = arith.constant 0 : index
    %76 = arith.index_cast %73 : i32 to index
    %c0_60 = arith.constant 0 : index
    %77 = vector.load %arg8[%c0_59, %76, %c0_60] : memref<3x128x64xf32, #tpu.memory_space<vmem>>, vector<1x1x64xf32>
    %78 = vector.shape_cast %77 : vector<1x1x64xf32> to vector<1x64xf32>
    %c0_61 = arith.constant 0 : index
    %c4_62 = arith.constant 4 : index
    %c0_63 = arith.constant 0 : index
    %79 = vector.load %arg9[%c0_61, %c4_62, %c0_63] : memref<3x16x64xf32, #tpu.memory_space<vmem>>, vector<1x1x64xf32>
    %80 = vector.shape_cast %79 : vector<1x1x64xf32> to vector<1x64xf32>
    %81 = vector.shape_cast %78 : vector<1x64xf32> to vector<1x1x64xf32>
    tpu.vector_store %arg9[%c0_61, %c4_62, %c0_63], %81 {strides = array<i32>} : memref<3x16x64xf32, #tpu.memory_space<vmem>>, vector<1x1x64xf32>,
    %c0_64 = arith.constant 0 : index
    %82 = arith.index_cast %75 : i32 to index
    %c0_65 = arith.constant 0 : index
    %83 = vector.load %arg8[%c0_64, %82, %c0_65] : memref<3x128x64xf32, #tpu.memory_space<vmem>>, vector<1x1x64xf32>
    %84 = vector.shape_cast %83 : vector<1x1x64xf32> to vector<1x64xf32>
    %c0_66 = arith.constant 0 : index
    %c12 = arith.constant 12 : index
    %c0_67 = arith.constant 0 : index
    %85 = vector.load %arg9[%c0_66, %c12, %c0_67] : memref<3x16x64xf32, #tpu.memory_space<vmem>>, vector<1x1x64xf32>
    %86 = vector.shape_cast %85 : vector<1x1x64xf32> to vector<1x64xf32>
    %87 = vector.shape_cast %84 : vector<1x64xf32> to vector<1x1x64xf32>
    tpu.vector_store %arg9[%c0_66, %c12, %c0_67], %87 {strides = array<i32>} : memref<3x16x64xf32, #tpu.memory_space<vmem>>, vector<1x1x64xf32>,
    %c5 = arith.constant 5 : index
    %88 = memref.load %arg1[%c5] : memref<8xi32, #tpu.memory_space<smem>>
    %c5_68 = arith.constant 5 : index
    %89 = memref.load %arg2[%c5_68] : memref<8xi32, #tpu.memory_space<smem>>
    %c48_i32_69 = arith.constant 48 : i32
    %90 = arith.addi %c48_i32_69, %89 : i32
    %c0_70 = arith.constant 0 : index
    %91 = arith.index_cast %88 : i32 to index
    %c0_71 = arith.constant 0 : index
    %92 = vector.load %arg8[%c0_70, %91, %c0_71] : memref<3x128x64xf32, #tpu.memory_space<vmem>>, vector<1x1x64xf32>
    %93 = vector.shape_cast %92 : vector<1x1x64xf32> to vector<1x64xf32>
    %c0_72 = arith.constant 0 : index
    %c5_73 = arith.constant 5 : index
    %c0_74 = arith.constant 0 : index
    %94 = vector.load %arg9[%c0_72, %c5_73, %c0_74] : memref<3x16x64xf32, #tpu.memory_space<vmem>>, vector<1x1x64xf32>
    %95 = vector.shape_cast %94 : vector<1x1x64xf32> to vector<1x64xf32>
    %96 = vector.shape_cast %93 : vector<1x64xf32> to vector<1x1x64xf32>
    tpu.vector_store %arg9[%c0_72, %c5_73, %c0_74], %96 {strides = array<i32>} : memref<3x16x64xf32, #tpu.memory_space<vmem>>, vector<1x1x64xf32>,
    %c0_75 = arith.constant 0 : index
    %97 = arith.index_cast %90 : i32 to index
    %c0_76 = arith.constant 0 : index
    %98 = vector.load %arg8[%c0_75, %97, %c0_76] : memref<3x128x64xf32, #tpu.memory_space<vmem>>, vector<1x1x64xf32>
    %99 = vector.shape_cast %98 : vector<1x1x64xf32> to vector<1x64xf32>
    %c0_77 = arith.constant 0 : index
    %c13 = arith.constant 13 : index
    %c0_78 = arith.constant 0 : index
    %100 = vector.load %arg9[%c0_77, %c13, %c0_78] : memref<3x16x64xf32, #tpu.memory_space<vmem>>, vector<1x1x64xf32>
    %101 = vector.shape_cast %100 : vector<1x1x64xf32> to vector<1x64xf32>
    %102 = vector.shape_cast %99 : vector<1x64xf32> to vector<1x1x64xf32>
    tpu.vector_store %arg9[%c0_77, %c13, %c0_78], %102 {strides = array<i32>} : memref<3x16x64xf32, #tpu.memory_space<vmem>>, vector<1x1x64xf32>,
    %c6 = arith.constant 6 : index
    %103 = memref.load %arg1[%c6] : memref<8xi32, #tpu.memory_space<smem>>
    %c6_79 = arith.constant 6 : index
    %104 = memref.load %arg2[%c6_79] : memref<8xi32, #tpu.memory_space<smem>>
    %c48_i32_80 = arith.constant 48 : i32
    %105 = arith.addi %c48_i32_80, %104 : i32
    %c0_81 = arith.constant 0 : index
    %106 = arith.index_cast %103 : i32 to index
    %c0_82 = arith.constant 0 : index
    %107 = vector.load %arg8[%c0_81, %106, %c0_82] : memref<3x128x64xf32, #tpu.memory_space<vmem>>, vector<1x1x64xf32>
    %108 = vector.shape_cast %107 : vector<1x1x64xf32> to vector<1x64xf32>
    %c0_83 = arith.constant 0 : index
    %c6_84 = arith.constant 6 : index
    %c0_85 = arith.constant 0 : index
    %109 = vector.load %arg9[%c0_83, %c6_84, %c0_85] : memref<3x16x64xf32, #tpu.memory_space<vmem>>, vector<1x1x64xf32>
    %110 = vector.shape_cast %109 : vector<1x1x64xf32> to vector<1x64xf32>
    %111 = vector.shape_cast %108 : vector<1x64xf32> to vector<1x1x64xf32>
    tpu.vector_store %arg9[%c0_83, %c6_84, %c0_85], %111 {strides = array<i32>} : memref<3x16x64xf32, #tpu.memory_space<vmem>>, vector<1x1x64xf32>,
    %c0_86 = arith.constant 0 : index
    %112 = arith.index_cast %105 : i32 to index
    %c0_87 = arith.constant 0 : index
    %113 = vector.load %arg8[%c0_86, %112, %c0_87] : memref<3x128x64xf32, #tpu.memory_space<vmem>>, vector<1x1x64xf32>
    %114 = vector.shape_cast %113 : vector<1x1x64xf32> to vector<1x64xf32>
    %c0_88 = arith.constant 0 : index
    %c14 = arith.constant 14 : index
    %c0_89 = arith.constant 0 : index
    %115 = vector.load %arg9[%c0_88, %c14, %c0_89] : memref<3x16x64xf32, #tpu.memory_space<vmem>>, vector<1x1x64xf32>
    %116 = vector.shape_cast %115 : vector<1x1x64xf32> to vector<1x64xf32>
    %117 = vector.shape_cast %114 : vector<1x64xf32> to vector<1x1x64xf32>
    tpu.vector_store %arg9[%c0_88, %c14, %c0_89], %117 {strides = array<i32>} : memref<3x16x64xf32, #tpu.memory_space<vmem>>, vector<1x1x64xf32>,
    %c7 = arith.constant 7 : index
    %118 = memref.load %arg1[%c7] : memref<8xi32, #tpu.memory_space<smem>>
    %c7_90 = arith.constant 7 : index
    %119 = memref.load %arg2[%c7_90] : memref<8xi32, #tpu.memory_space<smem>>
    %c48_i32_91 = arith.constant 48 : i32
    %120 = arith.addi %c48_i32_91, %119 : i32
    %c0_92 = arith.constant 0 : index
    %121 = arith.index_cast %118 : i32 to index
    %c0_93 = arith.constant 0 : index
    %122 = vector.load %arg8[%c0_92, %121, %c0_93] : memref<3x128x64xf32, #tpu.memory_space<vmem>>, vector<1x1x64xf32>
    %123 = vector.shape_cast %122 : vector<1x1x64xf32> to vector<1x64xf32>
    %c0_94 = arith.constant 0 : index
    %c7_95 = arith.constant 7 : index
    %c0_96 = arith.constant 0 : index
    %124 = vector.load %arg9[%c0_94, %c7_95, %c0_96] : memref<3x16x64xf32, #tpu.memory_space<vmem>>, vector<1x1x64xf32>
    %125 = vector.shape_cast %124 : vector<1x1x64xf32> to vector<1x64xf32>
    %126 = vector.shape_cast %123 : vector<1x64xf32> to vector<1x1x64xf32>
    tpu.vector_store %arg9[%c0_94, %c7_95, %c0_96], %126 {strides = array<i32>} : memref<3x16x64xf32, #tpu.memory_space<vmem>>, vector<1x1x64xf32>,
    %c0_97 = arith.constant 0 : index
    %127 = arith.index_cast %120 : i32 to index
    %c0_98 = arith.constant 0 : index
    %128 = vector.load %arg8[%c0_97, %127, %c0_98] : memref<3x128x64xf32, #tpu.memory_space<vmem>>, vector<1x1x64xf32>
    %129 = vector.shape_cast %128 : vector<1x1x64xf32> to vector<1x64xf32>
    %c0_99 = arith.constant 0 : index
    %c15 = arith.constant 15 : index
    %c0_100 = arith.constant 0 : index
    %130 = vector.load %arg9[%c0_99, %c15, %c0_100] : memref<3x16x64xf32, #tpu.memory_space<vmem>>, vector<1x1x64xf32>
    %131 = vector.shape_cast %130 : vector<1x1x64xf32> to vector<1x64xf32>
    %132 = vector.shape_cast %129 : vector<1x64xf32> to vector<1x1x64xf32>
    tpu.vector_store %arg9[%c0_99, %c15, %c0_100], %132 {strides = array<i32>} : memref<3x16x64xf32, #tpu.memory_space<vmem>>, vector<1x1x64xf32>,
    %c0_101 = arith.constant 0 : index
    %133 = memref.load %arg1[%c0_101] : memref<8xi32, #tpu.memory_space<smem>>
    %c0_102 = arith.constant 0 : index
    %134 = memref.load %arg2[%c0_102] : memref<8xi32, #tpu.memory_space<smem>>
    %c48_i32_103 = arith.constant 48 : i32
    %135 = arith.addi %c48_i32_103, %134 : i32
    %c1_104 = arith.constant 1 : index
    %136 = arith.index_cast %133 : i32 to index
    %c0_105 = arith.constant 0 : index
    %137 = vector.load %arg8[%c1_104, %136, %c0_105] : memref<3x128x64xf32, #tpu.memory_space<vmem>>, vector<1x1x64xf32>
    %138 = vector.shape_cast %137 : vector<1x1x64xf32> to vector<1x64xf32>
    %c1_106 = arith.constant 1 : index
    %c0_107 = arith.constant 0 : index
    %c0_108 = arith.constant 0 : index
    %139 = vector.load %arg9[%c1_106, %c0_107, %c0_108] : memref<3x16x64xf32, #tpu.memory_space<vmem>>, vector<1x1x64xf32>
    %140 = vector.shape_cast %139 : vector<1x1x64xf32> to vector<1x64xf32>
    %141 = vector.shape_cast %138 : vector<1x64xf32> to vector<1x1x64xf32>
    tpu.vector_store %arg9[%c1_106, %c0_107, %c0_108], %141 {strides = array<i32>} : memref<3x16x64xf32, #tpu.memory_space<vmem>>, vector<1x1x64xf32>,
    %c1_109 = arith.constant 1 : index
    %142 = arith.index_cast %135 : i32 to index
    %c0_110 = arith.constant 0 : index
    %143 = vector.load %arg8[%c1_109, %142, %c0_110] : memref<3x128x64xf32, #tpu.memory_space<vmem>>, vector<1x1x64xf32>
    %144 = vector.shape_cast %143 : vector<1x1x64xf32> to vector<1x64xf32>
    %c1_111 = arith.constant 1 : index
    %c8_112 = arith.constant 8 : index
    %c0_113 = arith.constant 0 : index
    %145 = vector.load %arg9[%c1_111, %c8_112, %c0_113] : memref<3x16x64xf32, #tpu.memory_space<vmem>>, vector<1x1x64xf32>
    %146 = vector.shape_cast %145 : vector<1x1x64xf32> to vector<1x64xf32>
    %147 = vector.shape_cast %144 : vector<1x64xf32> to vector<1x1x64xf32>
    tpu.vector_store %arg9[%c1_111, %c8_112, %c0_113], %147 {strides = array<i32>} : memref<3x16x64xf32, #tpu.memory_space<vmem>>, vector<1x1x64xf32>,
    %c1_114 = arith.constant 1 : index
    %148 = memref.load %arg1[%c1_114] : memref<8xi32, #tpu.memory_space<smem>>
    %c1_115 = arith.constant 1 : index
    %149 = memref.load %arg2[%c1_115] : memref<8xi32, #tpu.memory_space<smem>>
    %c48_i32_116 = arith.constant 48 : i32
    %150 = arith.addi %c48_i32_116, %149 : i32
    %c1_117 = arith.constant 1 : index
    %151 = arith.index_cast %148 : i32 to index
    %c0_118 = arith.constant 0 : index
    %152 = vector.load %arg8[%c1_117, %151, %c0_118] : memref<3x128x64xf32, #tpu.memory_space<vmem>>, vector<1x1x64xf32>
    %153 = vector.shape_cast %152 : vector<1x1x64xf32> to vector<1x64xf32>
    %c1_119 = arith.constant 1 : index
    %c1_120 = arith.constant 1 : index
    %c0_121 = arith.constant 0 : index
    %154 = vector.load %arg9[%c1_119, %c1_120, %c0_121] : memref<3x16x64xf32, #tpu.memory_space<vmem>>, vector<1x1x64xf32>
    %155 = vector.shape_cast %154 : vector<1x1x64xf32> to vector<1x64xf32>
    %156 = vector.shape_cast %153 : vector<1x64xf32> to vector<1x1x64xf32>
    tpu.vector_store %arg9[%c1_119, %c1_120, %c0_121], %156 {strides = array<i32>} : memref<3x16x64xf32, #tpu.memory_space<vmem>>, vector<1x1x64xf32>,
    %c1_122 = arith.constant 1 : index
    %157 = arith.index_cast %150 : i32 to index
    %c0_123 = arith.constant 0 : index
    %158 = vector.load %arg8[%c1_122, %157, %c0_123] : memref<3x128x64xf32, #tpu.memory_space<vmem>>, vector<1x1x64xf32>
    %159 = vector.shape_cast %158 : vector<1x1x64xf32> to vector<1x64xf32>
    %c1_124 = arith.constant 1 : index
    %c9_125 = arith.constant 9 : index
    %c0_126 = arith.constant 0 : index
    %160 = vector.load %arg9[%c1_124, %c9_125, %c0_126] : memref<3x16x64xf32, #tpu.memory_space<vmem>>, vector<1x1x64xf32>
    %161 = vector.shape_cast %160 : vector<1x1x64xf32> to vector<1x64xf32>
    %162 = vector.shape_cast %159 : vector<1x64xf32> to vector<1x1x64xf32>
    tpu.vector_store %arg9[%c1_124, %c9_125, %c0_126], %162 {strides = array<i32>} : memref<3x16x64xf32, #tpu.memory_space<vmem>>, vector<1x1x64xf32>,
    %c2_127 = arith.constant 2 : index
    %163 = memref.load %arg1[%c2_127] : memref<8xi32, #tpu.memory_space<smem>>
    %c2_128 = arith.constant 2 : index
    %164 = memref.load %arg2[%c2_128] : memref<8xi32, #tpu.memory_space<smem>>
    %c48_i32_129 = arith.constant 48 : i32
    %165 = arith.addi %c48_i32_129, %164 : i32
    %c1_130 = arith.constant 1 : index
    %166 = arith.index_cast %163 : i32 to index
    %c0_131 = arith.constant 0 : index
    %167 = vector.load %arg8[%c1_130, %166, %c0_131] : memref<3x128x64xf32, #tpu.memory_space<vmem>>, vector<1x1x64xf32>
    %168 = vector.shape_cast %167 : vector<1x1x64xf32> to vector<1x64xf32>
    %c1_132 = arith.constant 1 : index
    %c2_133 = arith.constant 2 : index
    %c0_134 = arith.constant 0 : index
    %169 = vector.load %arg9[%c1_132, %c2_133, %c0_134] : memref<3x16x64xf32, #tpu.memory_space<vmem>>, vector<1x1x64xf32>
    %170 = vector.shape_cast %169 : vector<1x1x64xf32> to vector<1x64xf32>
    %171 = vector.shape_cast %168 : vector<1x64xf32> to vector<1x1x64xf32>
    tpu.vector_store %arg9[%c1_132, %c2_133, %c0_134], %171 {strides = array<i32>} : memref<3x16x64xf32, #tpu.memory_space<vmem>>, vector<1x1x64xf32>,
    %c1_135 = arith.constant 1 : index
    %172 = arith.index_cast %165 : i32 to index
    %c0_136 = arith.constant 0 : index
    %173 = vector.load %arg8[%c1_135, %172, %c0_136] : memref<3x128x64xf32, #tpu.memory_space<vmem>>, vector<1x1x64xf32>
    %174 = vector.shape_cast %173 : vector<1x1x64xf32> to vector<1x64xf32>
    %c1_137 = arith.constant 1 : index
    %c10_138 = arith.constant 10 : index
    %c0_139 = arith.constant 0 : index
    %175 = vector.load %arg9[%c1_137, %c10_138, %c0_139] : memref<3x16x64xf32, #tpu.memory_space<vmem>>, vector<1x1x64xf32>
    %176 = vector.shape_cast %175 : vector<1x1x64xf32> to vector<1x64xf32>
    %177 = vector.shape_cast %174 : vector<1x64xf32> to vector<1x1x64xf32>
    tpu.vector_store %arg9[%c1_137, %c10_138, %c0_139], %177 {strides = array<i32>} : memref<3x16x64xf32, #tpu.memory_space<vmem>>, vector<1x1x64xf32>,
    %c3_140 = arith.constant 3 : index
    %178 = memref.load %arg1[%c3_140] : memref<8xi32, #tpu.memory_space<smem>>
    %c3_141 = arith.constant 3 : index
    %179 = memref.load %arg2[%c3_141] : memref<8xi32, #tpu.memory_space<smem>>
    %c48_i32_142 = arith.constant 48 : i32
    %180 = arith.addi %c48_i32_142, %179 : i32
    %c1_143 = arith.constant 1 : index
    %181 = arith.index_cast %178 : i32 to index
    %c0_144 = arith.constant 0 : index
    %182 = vector.load %arg8[%c1_143, %181, %c0_144] : memref<3x128x64xf32, #tpu.memory_space<vmem>>, vector<1x1x64xf32>
    %183 = vector.shape_cast %182 : vector<1x1x64xf32> to vector<1x64xf32>
    %c1_145 = arith.constant 1 : index
    %c3_146 = arith.constant 3 : index
    %c0_147 = arith.constant 0 : index
    %184 = vector.load %arg9[%c1_145, %c3_146, %c0_147] : memref<3x16x64xf32, #tpu.memory_space<vmem>>, vector<1x1x64xf32>
    %185 = vector.shape_cast %184 : vector<1x1x64xf32> to vector<1x64xf32>
    %186 = vector.shape_cast %183 : vector<1x64xf32> to vector<1x1x64xf32>
    tpu.vector_store %arg9[%c1_145, %c3_146, %c0_147], %186 {strides = array<i32>} : memref<3x16x64xf32, #tpu.memory_space<vmem>>, vector<1x1x64xf32>,
    %c1_148 = arith.constant 1 : index
    %187 = arith.index_cast %180 : i32 to index
    %c0_149 = arith.constant 0 : index
    %188 = vector.load %arg8[%c1_148, %187, %c0_149] : memref<3x128x64xf32, #tpu.memory_space<vmem>>, vector<1x1x64xf32>
    %189 = vector.shape_cast %188 : vector<1x1x64xf32> to vector<1x64xf32>
    %c1_150 = arith.constant 1 : index
    %c11_151 = arith.constant 11 : index
    %c0_152 = arith.constant 0 : index
    %190 = vector.load %arg9[%c1_150, %c11_151, %c0_152] : memref<3x16x64xf32, #tpu.memory_space<vmem>>, vector<1x1x64xf32>
    %191 = vector.shape_cast %190 : vector<1x1x64xf32> to vector<1x64xf32>
    %192 = vector.shape_cast %189 : vector<1x64xf32> to vector<1x1x64xf32>
    tpu.vector_store %arg9[%c1_150, %c11_151, %c0_152], %192 {strides = array<i32>} : memref<3x16x64xf32, #tpu.memory_space<vmem>>, vector<1x1x64xf32>,
    %c4_153 = arith.constant 4 : index
    %193 = memref.load %arg1[%c4_153] : memref<8xi32, #tpu.memory_space<smem>>
    %c4_154 = arith.constant 4 : index
    %194 = memref.load %arg2[%c4_154] : memref<8xi32, #tpu.memory_space<smem>>
    %c48_i32_155 = arith.constant 48 : i32
    %195 = arith.addi %c48_i32_155, %194 : i32
    %c1_156 = arith.constant 1 : index
    %196 = arith.index_cast %193 : i32 to index
    %c0_157 = arith.constant 0 : index
    %197 = vector.load %arg8[%c1_156, %196, %c0_157] : memref<3x128x64xf32, #tpu.memory_space<vmem>>, vector<1x1x64xf32>
    %198 = vector.shape_cast %197 : vector<1x1x64xf32> to vector<1x64xf32>
    %c1_158 = arith.constant 1 : index
    %c4_159 = arith.constant 4 : index
    %c0_160 = arith.constant 0 : index
    %199 = vector.load %arg9[%c1_158, %c4_159, %c0_160] : memref<3x16x64xf32, #tpu.memory_space<vmem>>, vector<1x1x64xf32>
    %200 = vector.shape_cast %199 : vector<1x1x64xf32> to vector<1x64xf32>
    %201 = vector.shape_cast %198 : vector<1x64xf32> to vector<1x1x64xf32>
    tpu.vector_store %arg9[%c1_158, %c4_159, %c0_160], %201 {strides = array<i32>} : memref<3x16x64xf32, #tpu.memory_space<vmem>>, vector<1x1x64xf32>,
    %c1_161 = arith.constant 1 : index
    %202 = arith.index_cast %195 : i32 to index
    %c0_162 = arith.constant 0 : index
    %203 = vector.load %arg8[%c1_161, %202, %c0_162] : memref<3x128x64xf32, #tpu.memory_space<vmem>>, vector<1x1x64xf32>
    %204 = vector.shape_cast %203 : vector<1x1x64xf32> to vector<1x64xf32>
    %c1_163 = arith.constant 1 : index
    %c12_164 = arith.constant 12 : index
    %c0_165 = arith.constant 0 : index
    %205 = vector.load %arg9[%c1_163, %c12_164, %c0_165] : memref<3x16x64xf32, #tpu.memory_space<vmem>>, vector<1x1x64xf32>
    %206 = vector.shape_cast %205 : vector<1x1x64xf32> to vector<1x64xf32>
    %207 = vector.shape_cast %204 : vector<1x64xf32> to vector<1x1x64xf32>
    tpu.vector_store %arg9[%c1_163, %c12_164, %c0_165], %207 {strides = array<i32>} : memref<3x16x64xf32, #tpu.memory_space<vmem>>, vector<1x1x64xf32>,
    %c5_166 = arith.constant 5 : index
    %208 = memref.load %arg1[%c5_166] : memref<8xi32, #tpu.memory_space<smem>>
    %c5_167 = arith.constant 5 : index
    %209 = memref.load %arg2[%c5_167] : memref<8xi32, #tpu.memory_space<smem>>
    %c48_i32_168 = arith.constant 48 : i32
    %210 = arith.addi %c48_i32_168, %209 : i32
    %c1_169 = arith.constant 1 : index
    %211 = arith.index_cast %208 : i32 to index
    %c0_170 = arith.constant 0 : index
    %212 = vector.load %arg8[%c1_169, %211, %c0_170] : memref<3x128x64xf32, #tpu.memory_space<vmem>>, vector<1x1x64xf32>
    %213 = vector.shape_cast %212 : vector<1x1x64xf32> to vector<1x64xf32>
    %c1_171 = arith.constant 1 : index
    %c5_172 = arith.constant 5 : index
    %c0_173 = arith.constant 0 : index
    %214 = vector.load %arg9[%c1_171, %c5_172, %c0_173] : memref<3x16x64xf32, #tpu.memory_space<vmem>>, vector<1x1x64xf32>
    %215 = vector.shape_cast %214 : vector<1x1x64xf32> to vector<1x64xf32>
    %216 = vector.shape_cast %213 : vector<1x64xf32> to vector<1x1x64xf32>
    tpu.vector_store %arg9[%c1_171, %c5_172, %c0_173], %216 {strides = array<i32>} : memref<3x16x64xf32, #tpu.memory_space<vmem>>, vector<1x1x64xf32>,
    %c1_174 = arith.constant 1 : index
    %217 = arith.index_cast %210 : i32 to index
    %c0_175 = arith.constant 0 : index
    %218 = vector.load %arg8[%c1_174, %217, %c0_175] : memref<3x128x64xf32, #tpu.memory_space<vmem>>, vector<1x1x64xf32>
    %219 = vector.shape_cast %218 : vector<1x1x64xf32> to vector<1x64xf32>
    %c1_176 = arith.constant 1 : index
    %c13_177 = arith.constant 13 : index
    %c0_178 = arith.constant 0 : index
    %220 = vector.load %arg9[%c1_176, %c13_177, %c0_178] : memref<3x16x64xf32, #tpu.memory_space<vmem>>, vector<1x1x64xf32>
    %221 = vector.shape_cast %220 : vector<1x1x64xf32> to vector<1x64xf32>
    %222 = vector.shape_cast %219 : vector<1x64xf32> to vector<1x1x64xf32>
    tpu.vector_store %arg9[%c1_176, %c13_177, %c0_178], %222 {strides = array<i32>} : memref<3x16x64xf32, #tpu.memory_space<vmem>>, vector<1x1x64xf32>,
    %c6_179 = arith.constant 6 : index
    %223 = memref.load %arg1[%c6_179] : memref<8xi32, #tpu.memory_space<smem>>
    %c6_180 = arith.constant 6 : index
    %224 = memref.load %arg2[%c6_180] : memref<8xi32, #tpu.memory_space<smem>>
    %c48_i32_181 = arith.constant 48 : i32
    %225 = arith.addi %c48_i32_181, %224 : i32
    %c1_182 = arith.constant 1 : index
    %226 = arith.index_cast %223 : i32 to index
    %c0_183 = arith.constant 0 : index
    %227 = vector.load %arg8[%c1_182, %226, %c0_183] : memref<3x128x64xf32, #tpu.memory_space<vmem>>, vector<1x1x64xf32>
    %228 = vector.shape_cast %227 : vector<1x1x64xf32> to vector<1x64xf32>
    %c1_184 = arith.constant 1 : index
    %c6_185 = arith.constant 6 : index
    %c0_186 = arith.constant 0 : index
    %229 = vector.load %arg9[%c1_184, %c6_185, %c0_186] : memref<3x16x64xf32, #tpu.memory_space<vmem>>, vector<1x1x64xf32>
    %230 = vector.shape_cast %229 : vector<1x1x64xf32> to vector<1x64xf32>
    %231 = vector.shape_cast %228 : vector<1x64xf32> to vector<1x1x64xf32>
    tpu.vector_store %arg9[%c1_184, %c6_185, %c0_186], %231 {strides = array<i32>} : memref<3x16x64xf32, #tpu.memory_space<vmem>>, vector<1x1x64xf32>,
    %c1_187 = arith.constant 1 : index
    %232 = arith.index_cast %225 : i32 to index
    %c0_188 = arith.constant 0 : index
    %233 = vector.load %arg8[%c1_187, %232, %c0_188] : memref<3x128x64xf32, #tpu.memory_space<vmem>>, vector<1x1x64xf32>
    %234 = vector.shape_cast %233 : vector<1x1x64xf32> to vector<1x64xf32>
    %c1_189 = arith.constant 1 : index
    %c14_190 = arith.constant 14 : index
    %c0_191 = arith.constant 0 : index
    %235 = vector.load %arg9[%c1_189, %c14_190, %c0_191] : memref<3x16x64xf32, #tpu.memory_space<vmem>>, vector<1x1x64xf32>
    %236 = vector.shape_cast %235 : vector<1x1x64xf32> to vector<1x64xf32>
    %237 = vector.shape_cast %234 : vector<1x64xf32> to vector<1x1x64xf32>
    tpu.vector_store %arg9[%c1_189, %c14_190, %c0_191], %237 {strides = array<i32>} : memref<3x16x64xf32, #tpu.memory_space<vmem>>, vector<1x1x64xf32>,
    %c7_192 = arith.constant 7 : index
    %238 = memref.load %arg1[%c7_192] : memref<8xi32, #tpu.memory_space<smem>>
    %c7_193 = arith.constant 7 : index
    %239 = memref.load %arg2[%c7_193] : memref<8xi32, #tpu.memory_space<smem>>
    %c48_i32_194 = arith.constant 48 : i32
    %240 = arith.addi %c48_i32_194, %239 : i32
    %c1_195 = arith.constant 1 : index
    %241 = arith.index_cast %238 : i32 to index
    %c0_196 = arith.constant 0 : index
    %242 = vector.load %arg8[%c1_195, %241, %c0_196] : memref<3x128x64xf32, #tpu.memory_space<vmem>>, vector<1x1x64xf32>
    %243 = vector.shape_cast %242 : vector<1x1x64xf32> to vector<1x64xf32>
    %c1_197 = arith.constant 1 : index
    %c7_198 = arith.constant 7 : index
    %c0_199 = arith.constant 0 : index
    %244 = vector.load %arg9[%c1_197, %c7_198, %c0_199] : memref<3x16x64xf32, #tpu.memory_space<vmem>>, vector<1x1x64xf32>
    %245 = vector.shape_cast %244 : vector<1x1x64xf32> to vector<1x64xf32>
    %246 = vector.shape_cast %243 : vector<1x64xf32> to vector<1x1x64xf32>
    tpu.vector_store %arg9[%c1_197, %c7_198, %c0_199], %246 {strides = array<i32>} : memref<3x16x64xf32, #tpu.memory_space<vmem>>, vector<1x1x64xf32>,
    %c1_200 = arith.constant 1 : index
    %247 = arith.index_cast %240 : i32 to index
    %c0_201 = arith.constant 0 : index
    %248 = vector.load %arg8[%c1_200, %247, %c0_201] : memref<3x128x64xf32, #tpu.memory_space<vmem>>, vector<1x1x64xf32>
    %249 = vector.shape_cast %248 : vector<1x1x64xf32> to vector<1x64xf32>
    %c1_202 = arith.constant 1 : index
    %c15_203 = arith.constant 15 : index
    %c0_204 = arith.constant 0 : index
    %250 = vector.load %arg9[%c1_202, %c15_203, %c0_204] : memref<3x16x64xf32, #tpu.memory_space<vmem>>, vector<1x1x64xf32>
    %251 = vector.shape_cast %250 : vector<1x1x64xf32> to vector<1x64xf32>
    %252 = vector.shape_cast %249 : vector<1x64xf32> to vector<1x1x64xf32>
    tpu.vector_store %arg9[%c1_202, %c15_203, %c0_204], %252 {strides = array<i32>} : memref<3x16x64xf32, #tpu.memory_space<vmem>>, vector<1x1x64xf32>,
    %c0_205 = arith.constant 0 : index
    %253 = memref.load %arg1[%c0_205] : memref<8xi32, #tpu.memory_space<smem>>
    %c0_206 = arith.constant 0 : index
    %254 = memref.load %arg2[%c0_206] : memref<8xi32, #tpu.memory_space<smem>>
    %c48_i32_207 = arith.constant 48 : i32
    %255 = arith.addi %c48_i32_207, %254 : i32
    %c2_208 = arith.constant 2 : index
    %256 = arith.index_cast %253 : i32 to index
    %c0_209 = arith.constant 0 : index
    %257 = vector.load %arg8[%c2_208, %256, %c0_209] : memref<3x128x64xf32, #tpu.memory_space<vmem>>, vector<1x1x64xf32>
    %258 = vector.shape_cast %257 : vector<1x1x64xf32> to vector<1x64xf32>
    %c2_210 = arith.constant 2 : index
    %c0_211 = arith.constant 0 : index
    %c0_212 = arith.constant 0 : index
    %259 = vector.load %arg9[%c2_210, %c0_211, %c0_212] : memref<3x16x64xf32, #tpu.memory_space<vmem>>, vector<1x1x64xf32>
    %260 = vector.shape_cast %259 : vector<1x1x64xf32> to vector<1x64xf32>
    %261 = vector.shape_cast %258 : vector<1x64xf32> to vector<1x1x64xf32>
    tpu.vector_store %arg9[%c2_210, %c0_211, %c0_212], %261 {strides = array<i32>} : memref<3x16x64xf32, #tpu.memory_space<vmem>>, vector<1x1x64xf32>,
    %c2_213 = arith.constant 2 : index
    %262 = arith.index_cast %255 : i32 to index
    %c0_214 = arith.constant 0 : index
    %263 = vector.load %arg8[%c2_213, %262, %c0_214] : memref<3x128x64xf32, #tpu.memory_space<vmem>>, vector<1x1x64xf32>
    %264 = vector.shape_cast %263 : vector<1x1x64xf32> to vector<1x64xf32>
    %c2_215 = arith.constant 2 : index
    %c8_216 = arith.constant 8 : index
    %c0_217 = arith.constant 0 : index
    %265 = vector.load %arg9[%c2_215, %c8_216, %c0_217] : memref<3x16x64xf32, #tpu.memory_space<vmem>>, vector<1x1x64xf32>
    %266 = vector.shape_cast %265 : vector<1x1x64xf32> to vector<1x64xf32>
    %267 = vector.shape_cast %264 : vector<1x64xf32> to vector<1x1x64xf32>
    tpu.vector_store %arg9[%c2_215, %c8_216, %c0_217], %267 {strides = array<i32>} : memref<3x16x64xf32, #tpu.memory_space<vmem>>, vector<1x1x64xf32>,
    %c1_218 = arith.constant 1 : index
    %268 = memref.load %arg1[%c1_218] : memref<8xi32, #tpu.memory_space<smem>>
    %c1_219 = arith.constant 1 : index
    %269 = memref.load %arg2[%c1_219] : memref<8xi32, #tpu.memory_space<smem>>
    %c48_i32_220 = arith.constant 48 : i32
    %270 = arith.addi %c48_i32_220, %269 : i32
    %c2_221 = arith.constant 2 : index
    %271 = arith.index_cast %268 : i32 to index
    %c0_222 = arith.constant 0 : index
    %272 = vector.load %arg8[%c2_221, %271, %c0_222] : memref<3x128x64xf32, #tpu.memory_space<vmem>>, vector<1x1x64xf32>
    %273 = vector.shape_cast %272 : vector<1x1x64xf32> to vector<1x64xf32>
    %c2_223 = arith.constant 2 : index
    %c1_224 = arith.constant 1 : index
    %c0_225 = arith.constant 0 : index
    %274 = vector.load %arg9[%c2_223, %c1_224, %c0_225] : memref<3x16x64xf32, #tpu.memory_space<vmem>>, vector<1x1x64xf32>
    %275 = vector.shape_cast %274 : vector<1x1x64xf32> to vector<1x64xf32>
    %276 = vector.shape_cast %273 : vector<1x64xf32> to vector<1x1x64xf32>
    tpu.vector_store %arg9[%c2_223, %c1_224, %c0_225], %276 {strides = array<i32>} : memref<3x16x64xf32, #tpu.memory_space<vmem>>, vector<1x1x64xf32>,
    %c2_226 = arith.constant 2 : index
    %277 = arith.index_cast %270 : i32 to index
    %c0_227 = arith.constant 0 : index
    %278 = vector.load %arg8[%c2_226, %277, %c0_227] : memref<3x128x64xf32, #tpu.memory_space<vmem>>, vector<1x1x64xf32>
    %279 = vector.shape_cast %278 : vector<1x1x64xf32> to vector<1x64xf32>
    %c2_228 = arith.constant 2 : index
    %c9_229 = arith.constant 9 : index
    %c0_230 = arith.constant 0 : index
    %280 = vector.load %arg9[%c2_228, %c9_229, %c0_230] : memref<3x16x64xf32, #tpu.memory_space<vmem>>, vector<1x1x64xf32>
    %281 = vector.shape_cast %280 : vector<1x1x64xf32> to vector<1x64xf32>
    %282 = vector.shape_cast %279 : vector<1x64xf32> to vector<1x1x64xf32>
    tpu.vector_store %arg9[%c2_228, %c9_229, %c0_230], %282 {strides = array<i32>} : memref<3x16x64xf32, #tpu.memory_space<vmem>>, vector<1x1x64xf32>,
    %c2_231 = arith.constant 2 : index
    %283 = memref.load %arg1[%c2_231] : memref<8xi32, #tpu.memory_space<smem>>
    %c2_232 = arith.constant 2 : index
    %284 = memref.load %arg2[%c2_232] : memref<8xi32, #tpu.memory_space<smem>>
    %c48_i32_233 = arith.constant 48 : i32
    %285 = arith.addi %c48_i32_233, %284 : i32
    %c2_234 = arith.constant 2 : index
    %286 = arith.index_cast %283 : i32 to index
    %c0_235 = arith.constant 0 : index
    %287 = vector.load %arg8[%c2_234, %286, %c0_235] : memref<3x128x64xf32, #tpu.memory_space<vmem>>, vector<1x1x64xf32>
    %288 = vector.shape_cast %287 : vector<1x1x64xf32> to vector<1x64xf32>
    %c2_236 = arith.constant 2 : index
    %c2_237 = arith.constant 2 : index
    %c0_238 = arith.constant 0 : index
    %289 = vector.load %arg9[%c2_236, %c2_237, %c0_238] : memref<3x16x64xf32, #tpu.memory_space<vmem>>, vector<1x1x64xf32>
    %290 = vector.shape_cast %289 : vector<1x1x64xf32> to vector<1x64xf32>
    %291 = vector.shape_cast %288 : vector<1x64xf32> to vector<1x1x64xf32>
    tpu.vector_store %arg9[%c2_236, %c2_237, %c0_238], %291 {strides = array<i32>} : memref<3x16x64xf32, #tpu.memory_space<vmem>>, vector<1x1x64xf32>,
    %c2_239 = arith.constant 2 : index
    %292 = arith.index_cast %285 : i32 to index
    %c0_240 = arith.constant 0 : index
    %293 = vector.load %arg8[%c2_239, %292, %c0_240] : memref<3x128x64xf32, #tpu.memory_space<vmem>>, vector<1x1x64xf32>
    %294 = vector.shape_cast %293 : vector<1x1x64xf32> to vector<1x64xf32>
    %c2_241 = arith.constant 2 : index
    %c10_242 = arith.constant 10 : index
    %c0_243 = arith.constant 0 : index
    %295 = vector.load %arg9[%c2_241, %c10_242, %c0_243] : memref<3x16x64xf32, #tpu.memory_space<vmem>>, vector<1x1x64xf32>
    %296 = vector.shape_cast %295 : vector<1x1x64xf32> to vector<1x64xf32>
    %297 = vector.shape_cast %294 : vector<1x64xf32> to vector<1x1x64xf32>
    tpu.vector_store %arg9[%c2_241, %c10_242, %c0_243], %297 {strides = array<i32>} : memref<3x16x64xf32, #tpu.memory_space<vmem>>, vector<1x1x64xf32>,
    %c3_244 = arith.constant 3 : index
    %298 = memref.load %arg1[%c3_244] : memref<8xi32, #tpu.memory_space<smem>>
    %c3_245 = arith.constant 3 : index
    %299 = memref.load %arg2[%c3_245] : memref<8xi32, #tpu.memory_space<smem>>
    %c48_i32_246 = arith.constant 48 : i32
    %300 = arith.addi %c48_i32_246, %299 : i32
    %c2_247 = arith.constant 2 : index
    %301 = arith.index_cast %298 : i32 to index
    %c0_248 = arith.constant 0 : index
    %302 = vector.load %arg8[%c2_247, %301, %c0_248] : memref<3x128x64xf32, #tpu.memory_space<vmem>>, vector<1x1x64xf32>
    %303 = vector.shape_cast %302 : vector<1x1x64xf32> to vector<1x64xf32>
    %c2_249 = arith.constant 2 : index
    %c3_250 = arith.constant 3 : index
    %c0_251 = arith.constant 0 : index
    %304 = vector.load %arg9[%c2_249, %c3_250, %c0_251] : memref<3x16x64xf32, #tpu.memory_space<vmem>>, vector<1x1x64xf32>
    %305 = vector.shape_cast %304 : vector<1x1x64xf32> to vector<1x64xf32>
    %306 = vector.shape_cast %303 : vector<1x64xf32> to vector<1x1x64xf32>
    tpu.vector_store %arg9[%c2_249, %c3_250, %c0_251], %306 {strides = array<i32>} : memref<3x16x64xf32, #tpu.memory_space<vmem>>, vector<1x1x64xf32>,
    %c2_252 = arith.constant 2 : index
    %307 = arith.index_cast %300 : i32 to index
    %c0_253 = arith.constant 0 : index
    %308 = vector.load %arg8[%c2_252, %307, %c0_253] : memref<3x128x64xf32, #tpu.memory_space<vmem>>, vector<1x1x64xf32>
    %309 = vector.shape_cast %308 : vector<1x1x64xf32> to vector<1x64xf32>
    %c2_254 = arith.constant 2 : index
    %c11_255 = arith.constant 11 : index
    %c0_256 = arith.constant 0 : index
    %310 = vector.load %arg9[%c2_254, %c11_255, %c0_256] : memref<3x16x64xf32, #tpu.memory_space<vmem>>, vector<1x1x64xf32>
    %311 = vector.shape_cast %310 : vector<1x1x64xf32> to vector<1x64xf32>
    %312 = vector.shape_cast %309 : vector<1x64xf32> to vector<1x1x64xf32>
    tpu.vector_store %arg9[%c2_254, %c11_255, %c0_256], %312 {strides = array<i32>} : memref<3x16x64xf32, #tpu.memory_space<vmem>>, vector<1x1x64xf32>,
    %c4_257 = arith.constant 4 : index
    %313 = memref.load %arg1[%c4_257] : memref<8xi32, #tpu.memory_space<smem>>
    %c4_258 = arith.constant 4 : index
    %314 = memref.load %arg2[%c4_258] : memref<8xi32, #tpu.memory_space<smem>>
    %c48_i32_259 = arith.constant 48 : i32
    %315 = arith.addi %c48_i32_259, %314 : i32
    %c2_260 = arith.constant 2 : index
    %316 = arith.index_cast %313 : i32 to index
    %c0_261 = arith.constant 0 : index
    %317 = vector.load %arg8[%c2_260, %316, %c0_261] : memref<3x128x64xf32, #tpu.memory_space<vmem>>, vector<1x1x64xf32>
    %318 = vector.shape_cast %317 : vector<1x1x64xf32> to vector<1x64xf32>
    %c2_262 = arith.constant 2 : index
    %c4_263 = arith.constant 4 : index
    %c0_264 = arith.constant 0 : index
    %319 = vector.load %arg9[%c2_262, %c4_263, %c0_264] : memref<3x16x64xf32, #tpu.memory_space<vmem>>, vector<1x1x64xf32>
    %320 = vector.shape_cast %319 : vector<1x1x64xf32> to vector<1x64xf32>
    %321 = vector.shape_cast %318 : vector<1x64xf32> to vector<1x1x64xf32>
    tpu.vector_store %arg9[%c2_262, %c4_263, %c0_264], %321 {strides = array<i32>} : memref<3x16x64xf32, #tpu.memory_space<vmem>>, vector<1x1x64xf32>,
    %c2_265 = arith.constant 2 : index
    %322 = arith.index_cast %315 : i32 to index
    %c0_266 = arith.constant 0 : index
    %323 = vector.load %arg8[%c2_265, %322, %c0_266] : memref<3x128x64xf32, #tpu.memory_space<vmem>>, vector<1x1x64xf32>
    %324 = vector.shape_cast %323 : vector<1x1x64xf32> to vector<1x64xf32>
    %c2_267 = arith.constant 2 : index
    %c12_268 = arith.constant 12 : index
    %c0_269 = arith.constant 0 : index
    %325 = vector.load %arg9[%c2_267, %c12_268, %c0_269] : memref<3x16x64xf32, #tpu.memory_space<vmem>>, vector<1x1x64xf32>
    %326 = vector.shape_cast %325 : vector<1x1x64xf32> to vector<1x64xf32>
    %327 = vector.shape_cast %324 : vector<1x64xf32> to vector<1x1x64xf32>
    tpu.vector_store %arg9[%c2_267, %c12_268, %c0_269], %327 {strides = array<i32>} : memref<3x16x64xf32, #tpu.memory_space<vmem>>, vector<1x1x64xf32>,
    %c5_270 = arith.constant 5 : index
    %328 = memref.load %arg1[%c5_270] : memref<8xi32, #tpu.memory_space<smem>>
    %c5_271 = arith.constant 5 : index
    %329 = memref.load %arg2[%c5_271] : memref<8xi32, #tpu.memory_space<smem>>
    %c48_i32_272 = arith.constant 48 : i32
    %330 = arith.addi %c48_i32_272, %329 : i32
    %c2_273 = arith.constant 2 : index
    %331 = arith.index_cast %328 : i32 to index
    %c0_274 = arith.constant 0 : index
    %332 = vector.load %arg8[%c2_273, %331, %c0_274] : memref<3x128x64xf32, #tpu.memory_space<vmem>>, vector<1x1x64xf32>
    %333 = vector.shape_cast %332 : vector<1x1x64xf32> to vector<1x64xf32>
    %c2_275 = arith.constant 2 : index
    %c5_276 = arith.constant 5 : index
    %c0_277 = arith.constant 0 : index
    %334 = vector.load %arg9[%c2_275, %c5_276, %c0_277] : memref<3x16x64xf32, #tpu.memory_space<vmem>>, vector<1x1x64xf32>
    %335 = vector.shape_cast %334 : vector<1x1x64xf32> to vector<1x64xf32>
    %336 = vector.shape_cast %333 : vector<1x64xf32> to vector<1x1x64xf32>
    tpu.vector_store %arg9[%c2_275, %c5_276, %c0_277], %336 {strides = array<i32>} : memref<3x16x64xf32, #tpu.memory_space<vmem>>, vector<1x1x64xf32>,
    %c2_278 = arith.constant 2 : index
    %337 = arith.index_cast %330 : i32 to index
    %c0_279 = arith.constant 0 : index
    %338 = vector.load %arg8[%c2_278, %337, %c0_279] : memref<3x128x64xf32, #tpu.memory_space<vmem>>, vector<1x1x64xf32>
    %339 = vector.shape_cast %338 : vector<1x1x64xf32> to vector<1x64xf32>
    %c2_280 = arith.constant 2 : index
    %c13_281 = arith.constant 13 : index
    %c0_282 = arith.constant 0 : index
    %340 = vector.load %arg9[%c2_280, %c13_281, %c0_282] : memref<3x16x64xf32, #tpu.memory_space<vmem>>, vector<1x1x64xf32>
    %341 = vector.shape_cast %340 : vector<1x1x64xf32> to vector<1x64xf32>
    %342 = vector.shape_cast %339 : vector<1x64xf32> to vector<1x1x64xf32>
    tpu.vector_store %arg9[%c2_280, %c13_281, %c0_282], %342 {strides = array<i32>} : memref<3x16x64xf32, #tpu.memory_space<vmem>>, vector<1x1x64xf32>,
    %c6_283 = arith.constant 6 : index
    %343 = memref.load %arg1[%c6_283] : memref<8xi32, #tpu.memory_space<smem>>
    %c6_284 = arith.constant 6 : index
    %344 = memref.load %arg2[%c6_284] : memref<8xi32, #tpu.memory_space<smem>>
    %c48_i32_285 = arith.constant 48 : i32
    %345 = arith.addi %c48_i32_285, %344 : i32
    %c2_286 = arith.constant 2 : index
    %346 = arith.index_cast %343 : i32 to index
    %c0_287 = arith.constant 0 : index
    %347 = vector.load %arg8[%c2_286, %346, %c0_287] : memref<3x128x64xf32, #tpu.memory_space<vmem>>, vector<1x1x64xf32>
    %348 = vector.shape_cast %347 : vector<1x1x64xf32> to vector<1x64xf32>
    %c2_288 = arith.constant 2 : index
    %c6_289 = arith.constant 6 : index
    %c0_290 = arith.constant 0 : index
    %349 = vector.load %arg9[%c2_288, %c6_289, %c0_290] : memref<3x16x64xf32, #tpu.memory_space<vmem>>, vector<1x1x64xf32>
    %350 = vector.shape_cast %349 : vector<1x1x64xf32> to vector<1x64xf32>
    %351 = vector.shape_cast %348 : vector<1x64xf32> to vector<1x1x64xf32>
    tpu.vector_store %arg9[%c2_288, %c6_289, %c0_290], %351 {strides = array<i32>} : memref<3x16x64xf32, #tpu.memory_space<vmem>>, vector<1x1x64xf32>,
    %c2_291 = arith.constant 2 : index
    %352 = arith.index_cast %345 : i32 to index
    %c0_292 = arith.constant 0 : index
    %353 = vector.load %arg8[%c2_291, %352, %c0_292] : memref<3x128x64xf32, #tpu.memory_space<vmem>>, vector<1x1x64xf32>
    %354 = vector.shape_cast %353 : vector<1x1x64xf32> to vector<1x64xf32>
    %c2_293 = arith.constant 2 : index
    %c14_294 = arith.constant 14 : index
    %c0_295 = arith.constant 0 : index
    %355 = vector.load %arg9[%c2_293, %c14_294, %c0_295] : memref<3x16x64xf32, #tpu.memory_space<vmem>>, vector<1x1x64xf32>
    %356 = vector.shape_cast %355 : vector<1x1x64xf32> to vector<1x64xf32>
    %357 = vector.shape_cast %354 : vector<1x64xf32> to vector<1x1x64xf32>
    tpu.vector_store %arg9[%c2_293, %c14_294, %c0_295], %357 {strides = array<i32>} : memref<3x16x64xf32, #tpu.memory_space<vmem>>, vector<1x1x64xf32>,
    %c7_296 = arith.constant 7 : index
    %358 = memref.load %arg1[%c7_296] : memref<8xi32, #tpu.memory_space<smem>>
    %c7_297 = arith.constant 7 : index
    %359 = memref.load %arg2[%c7_297] : memref<8xi32, #tpu.memory_space<smem>>
    %c48_i32_298 = arith.constant 48 : i32
    %360 = arith.addi %c48_i32_298, %359 : i32
    %c2_299 = arith.constant 2 : index
    %361 = arith.index_cast %358 : i32 to index
    %c0_300 = arith.constant 0 : index
    %362 = vector.load %arg8[%c2_299, %361, %c0_300] : memref<3x128x64xf32, #tpu.memory_space<vmem>>, vector<1x1x64xf32>
    %363 = vector.shape_cast %362 : vector<1x1x64xf32> to vector<1x64xf32>
    %c2_301 = arith.constant 2 : index
    %c7_302 = arith.constant 7 : index
    %c0_303 = arith.constant 0 : index
    %364 = vector.load %arg9[%c2_301, %c7_302, %c0_303] : memref<3x16x64xf32, #tpu.memory_space<vmem>>, vector<1x1x64xf32>
    %365 = vector.shape_cast %364 : vector<1x1x64xf32> to vector<1x64xf32>
    %366 = vector.shape_cast %363 : vector<1x64xf32> to vector<1x1x64xf32>
    tpu.vector_store %arg9[%c2_301, %c7_302, %c0_303], %366 {strides = array<i32>} : memref<3x16x64xf32, #tpu.memory_space<vmem>>, vector<1x1x64xf32>,
    %c2_304 = arith.constant 2 : index
    %367 = arith.index_cast %360 : i32 to index
    %c0_305 = arith.constant 0 : index
    %368 = vector.load %arg8[%c2_304, %367, %c0_305] : memref<3x128x64xf32, #tpu.memory_space<vmem>>, vector<1x1x64xf32>
    %369 = vector.shape_cast %368 : vector<1x1x64xf32> to vector<1x64xf32>
    %c2_306 = arith.constant 2 : index
    %c15_307 = arith.constant 15 : index
    %c0_308 = arith.constant 0 : index
    %370 = vector.load %arg9[%c2_306, %c15_307, %c0_308] : memref<3x16x64xf32, #tpu.memory_space<vmem>>, vector<1x1x64xf32>
    %371 = vector.shape_cast %370 : vector<1x1x64xf32> to vector<1x64xf32>
    %372 = vector.shape_cast %369 : vector<1x64xf32> to vector<1x1x64xf32>
    tpu.vector_store %arg9[%c2_306, %c15_307, %c0_308], %372 {strides = array<i32>} : memref<3x16x64xf32, #tpu.memory_space<vmem>>, vector<1x1x64xf32>,
    %c0_309 = arith.constant 0 : index
    %c0_310 = arith.constant 0 : index
    %373 = vector.load %arg6[%c0_309, %c0_310] : memref<1x64xf32, #tpu.memory_space<vmem>>, vector<1x64xf32>
    %374 = vector.shape_cast %373 : vector<1x64xf32> to vector<1x64xf32>
    %375 = vector.broadcast %374 : vector<1x64xf32> to vector<16x64xf32>
    %c0_311 = arith.constant 0 : index
    %c0_312 = arith.constant 0 : index
    %c0_313 = arith.constant 0 : index
    %376 = vector.load %arg9[%c0_311, %c0_312, %c0_313] : memref<3x16x64xf32, #tpu.memory_space<vmem>>, vector<1x16x64xf32>
    %377 = vector.shape_cast %376 : vector<1x16x64xf32> to vector<16x64xf32>
    %c0_314 = arith.constant 0 : index
    %c0_315 = arith.constant 0 : index
    %378 = vector.load %arg5[%c0_314, %c0_315] : memref<192x64xf32, #tpu.memory_space<vmem>>, vector<64x64xf32>
    %cst_316 = arith.constant dense<0.000000e+00> : vector<16x64xf32>
    %379 = tpu.matmul %377, %378, %cst_316 {dimension_numbers = #tpu.dot_dimension_numbers<[1], [0], [0], [1], [0, 0, 1, 1], [], []>} : vector<16x64xf32>, vector<64x64xf32>, vector<16x64xf32> -> vector<16x64xf32>
    %380 = arith.addf %375, %379 : vector<16x64xf32>
    %c1_317 = arith.constant 1 : index
    %c0_318 = arith.constant 0 : index
    %c0_319 = arith.constant 0 : index
    %381 = vector.load %arg9[%c1_317, %c0_318, %c0_319] : memref<3x16x64xf32, #tpu.memory_space<vmem>>, vector<1x16x64xf32>
    %382 = vector.shape_cast %381 : vector<1x16x64xf32> to vector<16x64xf32>
    %c64 = arith.constant 64 : index
    %c0_320 = arith.constant 0 : index
    %383 = vector.load %arg5[%c64, %c0_320] : memref<192x64xf32, #tpu.memory_space<vmem>>, vector<64x64xf32>
    %cst_321 = arith.constant dense<0.000000e+00> : vector<16x64xf32>
    %384 = tpu.matmul %382, %383, %cst_321 {dimension_numbers = #tpu.dot_dimension_numbers<[1], [0], [0], [1], [0, 0, 1, 1], [], []>} : vector<16x64xf32>, vector<64x64xf32>, vector<16x64xf32> -> vector<16x64xf32>
    %385 = arith.addf %380, %384 : vector<16x64xf32>
    %c2_322 = arith.constant 2 : index
    %c0_323 = arith.constant 0 : index
    %c0_324 = arith.constant 0 : index
    %386 = vector.load %arg9[%c2_322, %c0_323, %c0_324] : memref<3x16x64xf32, #tpu.memory_space<vmem>>, vector<1x16x64xf32>
    %387 = vector.shape_cast %386 : vector<1x16x64xf32> to vector<16x64xf32>
    %c128 = arith.constant 128 : index
    %c0_325 = arith.constant 0 : index
    %388 = vector.load %arg5[%c128, %c0_325] : memref<192x64xf32, #tpu.memory_space<vmem>>, vector<64x64xf32>
    %cst_326 = arith.constant dense<0.000000e+00> : vector<16x64xf32>
    %389 = tpu.matmul %387, %388, %cst_326 {dimension_numbers = #tpu.dot_dimension_numbers<[1], [0], [0], [1], [0, 0, 1, 1], [], []>} : vector<16x64xf32>, vector<64x64xf32>, vector<16x64xf32> -> vector<16x64xf32>
    %390 = arith.addf %385, %389 : vector<16x64xf32>
    %391 = vector.extract_strided_slice %390 {offsets = [0, 0], sizes = [8, 64], strides = [1, 1]} : vector<16x64xf32> to vector<8x64xf32>
    %392 = vector.extract_strided_slice %390 {offsets = [8, 0], sizes = [8, 64], strides = [1, 1]} : vector<16x64xf32> to vector<8x64xf32>
    %393 = arith.mulf %391, %392 : vector<8x64xf32>
    %cst_327 = arith.constant dense<0.000000e+00> : vector<8xf32>
    %394 = vector.multi_reduction <add>, %393, %cst_327 [1] : vector<8x64xf32> to vector<8xf32>
    %395 = vector.shape_cast %394 : vector<8xf32> to vector<8x1xf32>
    %396 = vector.shape_cast %395 : vector<8x1xf32> to vector<8x1xf32>
    %397 = vector.broadcast %396 : vector<8x1xf32> to vector<8x128xf32>
    %c0_328 = arith.constant 0 : index
    %c0_329 = arith.constant 0 : index
    %398 = vector.load %arg7[%c0_328, %c0_329] : memref<8x128xf32, #tpu.memory_space<vmem>>, vector<8x128xf32>
    tpu.vector_store %arg7[%c0_328, %c0_329], %397 {strides = array<i32>} : memref<8x128xf32, #tpu.memory_space<vmem>>, vector<8x128xf32>,
    return
  }
  func.func @transform_0(%arg0: i32, %arg1: memref<8xi32, #tpu.memory_space<smem>>, %arg2: memref<8xi32, #tpu.memory_space<smem>>) -> (i32, i32) {
    %c0_i32 = arith.constant 0 : i32
    %c0_i32_0 = arith.constant 0 : i32
    %c0_i32_1 = arith.constant 0 : i32
    return %c0_i32, %c0_i32_0 : i32, i32
  }
  func.func @transform_1(%arg0: i32, %arg1: memref<8xi32, #tpu.memory_space<smem>>, %arg2: memref<8xi32, #tpu.memory_space<smem>>) -> (i32, i32) {
    %c0_i32 = arith.constant 0 : i32
    %c0_i32_0 = arith.constant 0 : i32
    %c0_i32_1 = arith.constant 0 : i32
    return %c0_i32, %c0_i32_0 : i32, i32
  }
  func.func @transform_2(%arg0: i32, %arg1: memref<8xi32, #tpu.memory_space<smem>>, %arg2: memref<8xi32, #tpu.memory_space<smem>>) -> (i32, i32) {
    %c0_i32 = arith.constant 0 : i32
    %c0_i32_0 = arith.constant 0 : i32
    %c0_i32_1 = arith.constant 0 : i32
    return %c0_i32, %c0_i32_0 : i32, i32
  }
  func.func @transform_3(%arg0: i32, %arg1: memref<8xi32, #tpu.memory_space<smem>>, %arg2: memref<8xi32, #tpu.memory_space<smem>>) -> (i32, i32) {
    %c0_i32 = arith.constant 0 : i32
    %c0_i32_0 = arith.constant 0 : i32
    %c0_i32_1 = arith.constant 0 : i32
    return %c0_i32, %c0_i32_0 : i32, i32
  }
  func.func @transform_4(%arg0: i32, %arg1: memref<8xi32, #tpu.memory_space<smem>>, %arg2: memref<8xi32, #tpu.memory_space<smem>>) -> (i32, i32) {
    %c0_i32 = arith.constant 0 : i32
    %c0_i32_0 = arith.constant 0 : i32
    %c0_i32_1 = arith.constant 0 : i32
    return %c0_i32, %c0_i32_0 : i32, i32
  }
}

</mosaic_0001>

<llo_original>
// kernel: tpu_custom_call.1
$region0: #{tpu_custom_call.1}
  #allocation0 [shape = 'u32[]', space=smem, size = 0x4, offset = 0x4, fixed_abs, tag = 'smem constant byte address 0x4 - core index']
  #allocation1 [shape = 'u32[144,128]{1,0:T(1,128)}', space=vmem, size = 0x12000, scoped, tag = 'internal scratch']
  #allocation2 [shape = 'f32[3,128,64]{2,1,0:T(8,128)}', space=vmem, size = 0x30000, scoped, tag = 'scratch operand']
  #allocation3 [shape = 'f32[3,16,64]{2,1,0:T(8,128)}', space=vmem, size = 0x6000, scoped, tag = 'scratch operand']
  #allocation4 [shape = 's32[1]{0}', space=sflag, size = 0x4, scoped, tag = 'scoped memory for tpu_custom_call.1']
  #allocation5 [shape = 'u8[512]{0}', space=smem, size = 0x200, scoped, tag = 'prefetched SMEM operand 0']
  #allocation6 [shape = 'u8[512]{0}', space=smem, size = 0x200, scoped, tag = 'prefetched SMEM operand 1']
  %s0 = inlined_call_operand.vmem [shape: s32[8], index: 0, kind: input, shape index: {}]
  %s1 = inlined_call_operand.vmem [shape: s32[8], index: 1, kind: input, shape index: {}]
  %s2 = inlined_call_operand.vmem [shape: f32[128,128], index: 2, kind: input, shape index: {}]
  %s3 = inlined_call_operand.vmem [shape: f32[128,64], index: 3, kind: input, shape index: {}]
  %s4 = inlined_call_operand.vmem [shape: f32[192,64], index: 4, kind: input, shape index: {}]
  %s5 = inlined_call_operand.vmem [shape: f32[1,64], index: 5, kind: input, shape index: {}]
  %s6 = inlined_call_operand.hbm [shape: f32[8,128], index: 6, kind: output, shape index: {}]
  %s7 = sld [smem:[#allocation0]]
  $region26: #{tpu_custom_call.1} parent=0
    _
  %s9 = ssub.s32 1, %s7
  %s10 = scalar_select 0, %s9, %s7
  %s11 = sshll.u32 %s0, 4
  %s12 = int_to_ptr.vmem [resolvable:$true] %s11
  %14 = dma.vmem_to_smem %s12, 16, [#allocation5], [#allocation4]
  %s15 = sshll.u32 %s1, 4
  %s16 = int_to_ptr.vmem [resolvable:$true] %s15
  %18 = dma.vmem_to_smem %s16, 16, [#allocation6], [#allocation4]
  %19 = dma.done [#allocation4], 32
  %20 = sfence
  $region1: #{tpu_custom_call.1} parent=0
    #allocation7 [shape = 'u8[4096]{0}', space=vmem, size = 0x1000, scoped, tag = 'output window, operand 0, single buffered']
    #allocation8 [shape = 's32[1]{0}', space=sflag, size = 0x4, scoped, tag = 'scoped memory for tpu_custom_call.1']
    %21 = vsyncpa [#allocation8], 0
    // Predicated region
    $region2: #{tpu_custom_call.1} parent=1 // pred_check
      _
    $region3: #{tpu_custom_call.1} parent=1 // pred_check_branch
      %23 = sbr.rel (0) target = $region5
    $region4: #{tpu_custom_call.1} parent=1 // pred_region
      _
    $region5: #{tpu_custom_call.1} parent=1 // pred_fallthru
      _
    // Predicated region
    $region6: #{tpu_custom_call.1} parent=1 // pred_check
      _
    $region7: #{tpu_custom_call.1} parent=1 // pred_check_branch
      %25 = sbr.rel (0) target = $region9
    $region8: #{tpu_custom_call.1} parent=1 // pred_region
      _
    $region9: #{tpu_custom_call.1} parent=1 // pred_fallthru
      _
    // Predicated region
    $region10: #{tpu_custom_call.1} parent=1 // pred_check
      _
    $region11: #{tpu_custom_call.1} parent=1 // pred_check_branch
      %27 = sbr.rel (0) target = $region13
    $region12: #{tpu_custom_call.1} parent=1 // pred_region
      _
    $region13: #{tpu_custom_call.1} parent=1 // pred_fallthru
      _
    // Predicated region
    $region14: #{tpu_custom_call.1} parent=1 // pred_check
      _
    $region15: #{tpu_custom_call.1} parent=1 // pred_check_branch
      %29 = sbr.rel (0) target = $region17
    $region16: #{tpu_custom_call.1} parent=1 // pred_region
      _
    $region17: #{tpu_custom_call.1} parent=1 // pred_fallthru
      _
    %v30 = vld [vmem:[%s2] sm:$0xff]
    %v31 = vld [vmem:[%s2 + $0x8] sm:$0xff]
    %v32 = vld [vmem:[%s2 + $0x10] sm:$0xff]
    %v33 = vld [vmem:[%s2 + $0x18] sm:$0xff]
    %v34 = vld [vmem:[%s2 + $0x20] sm:$0xff]
    %v35 = vld [vmem:[%s2 + $0x28] sm:$0xff]
    %v36 = vld [vmem:[%s2 + $0x30] sm:$0xff]
    %v37 = vld [vmem:[%s2 + $0x38] sm:$0xff]
    %v38 = vld [vmem:[%s2 + $0x40] sm:$0xff]
    %v39 = vld [vmem:[%s2 + $0x48] sm:$0xff]
    %v40 = vld [vmem:[%s2 + $0x50] sm:$0xff]
    %v41 = vld [vmem:[%s2 + $0x58] sm:$0xff]
    %v42 = vld [vmem:[%s2 + $0x60] sm:$0xff]
    %v43 = vld [vmem:[%s2 + $0x68] sm:$0xff]
    %v44 = vld [vmem:[%s2 + $0x70] sm:$0xff]
    %v45 = vld [vmem:[%s2 + $0x78] sm:$0xff]
    %v46 = vld [vmem:[%s3] sm:$0xff]
    %v47 = vld [vmem:[%s3 + $0x8] sm:$0xff]
    %v48 = vld [vmem:[%s3 + $0x10] sm:$0xff]
    %v49 = vld [vmem:[%s3 + $0x18] sm:$0xff]
    %v50 = vld [vmem:[%s3 + $0x20] sm:$0xff]
    %v51 = vld [vmem:[%s3 + $0x28] sm:$0xff]
    %v52 = vld [vmem:[%s3 + $0x30] sm:$0xff]
    %v53 = vld [vmem:[%s3 + $0x38] sm:$0xff]
    %v54 = vld [vmem:[%s3 + $0x40] sm:$0xff]
    %v55 = vld [vmem:[%s3 + $0x48] sm:$0xff]
    %v56 = vld [vmem:[%s3 + $0x50] sm:$0xff]
    %v57 = vld [vmem:[%s3 + $0x58] sm:$0xff]
    %v58 = vld [vmem:[%s3 + $0x60] sm:$0xff]
    %v59 = vld [vmem:[%s3 + $0x68] sm:$0xff]
    %v60 = vld [vmem:[%s3 + $0x70] sm:$0xff]
    %v61 = vld [vmem:[%s3 + $0x78] sm:$0xff]
    %vm62 = vcmask 523264
    %63 = vst.msk [vmem:[#allocation2] sm:$0xff] %vm62, %v46
    %64 = vst.msk [vmem:[#allocation2 + $0x8] sm:$0xff] %vm62, %v47
    %65 = vst.msk [vmem:[#allocation2 + $0x10] sm:$0xff] %vm62, %v48
    %66 = vst.msk [vmem:[#allocation2 + $0x18] sm:$0xff] %vm62, %v49
    %67 = vst.msk [vmem:[#allocation2 + $0x20] sm:$0xff] %vm62, %v50
    %68 = vst.msk [vmem:[#allocation2 + $0x28] sm:$0xff] %vm62, %v51
    %69 = vst.msk [vmem:[#allocation2 + $0x30] sm:$0xff] %vm62, %v52
    %70 = vst.msk [vmem:[#allocation2 + $0x38] sm:$0xff] %vm62, %v53
    %71 = vst.msk [vmem:[#allocation2 + $0x40] sm:$0xff] %vm62, %v54
    %72 = vst.msk [vmem:[#allocation2 + $0x48] sm:$0xff] %vm62, %v55
    %73 = vst.msk [vmem:[#allocation2 + $0x50] sm:$0xff] %vm62, %v56
    %74 = vst.msk [vmem:[#allocation2 + $0x58] sm:$0xff] %vm62, %v57
    %75 = vst.msk [vmem:[#allocation2 + $0x60] sm:$0xff] %vm62, %v58
    %76 = vst.msk [vmem:[#allocation2 + $0x68] sm:$0xff] %vm62, %v59
    %77 = vst.msk [vmem:[#allocation2 + $0x70] sm:$0xff] %vm62, %v60
    %78 = vst.msk [vmem:[#allocation2 + $0x78] sm:$0xff] %vm62, %v61
    %79 = vmatprep.subr.mxu0 0.0
    %80 = vmatpush1.msra.mxu0 %v46
    %81 = vmatprep.subr.mxu0 0.0
    %82 = vmatpush1.msra.mxu0 %v47
    %83 = vmatprep.subr.mxu0 0.0
    %84 = vmatpush1.msra.mxu0 %v48
    %85 = vmatprep.subr.mxu0 0.0
    %86 = vmatpush1.msra.mxu0 %v49
    %87 = vmatprep.subr.mxu0 0.0
    %88 = vmatpush1.msra.mxu0 %v50
    %89 = vmatprep.subr.mxu0 0.0
    %90 = vmatpush1.msra.mxu0 %v51
    %91 = vmatprep.subr.mxu0 0.0
    %92 = vmatpush1.msra.mxu0 %v52
    %93 = vmatprep.subr.mxu0 0.0
    %94 = vmatpush1.msra.mxu0 %v53
    %95 = vmatprep.subr.mxu0 0.0
    %96 = vmatpush1.msra.mxu0 %v54
    %97 = vmatprep.subr.mxu0 0.0
    %98 = vmatpush1.msra.mxu0 %v55
    %99 = vmatprep.subr.mxu0 0.0
    %100 = vmatpush1.msra.mxu0 %v56
    %101 = vmatprep.subr.mxu0 0.0
    %102 = vmatpush1.msra.mxu0 %v57
    %103 = vmatprep.subr.mxu0 0.0
    %104 = vmatpush1.msra.mxu0 %v58
    %105 = vmatprep.subr.mxu0 0.0
    %106 = vmatpush1.msra.mxu0 %v59
    %107 = vmatprep.subr.mxu0 0.0
    %108 = vmatpush1.msra.mxu0 %v60
    %109 = vmatprep.subr.mxu0 0.0
    %110 = vmatpush1.msra.mxu0 %v61
    %111 = vmatprep.subr.mxu0 0.0
    %112 = vmatpush1.msra.mxu0 0.0
    %113 = vmatprep.subr.mxu0 0.0
    %114 = vmatpush1.msra.mxu0 0.0
    %115 = vmatprep.subr.mxu0 0.0
    %116 = vmatpush1.msra.mxu0 0.0
    %117 = vmatprep.subr.mxu0 0.0
    %118 = vmatpush1.msra.mxu0 0.0
    %119 = vmatprep.subr.mxu0 0.0
    %120 = vmatpush1.msra.mxu0 0.0
    %121 = vmatprep.subr.mxu0 0.0
    %122 = vmatpush1.msra.mxu0 0.0
    %123 = vmatprep.subr.mxu0 0.0
    %124 = vmatpush1.msra.mxu0 0.0
    %125 = vmatprep.subr.mxu0 0.0
    %126 = vmatpush1.msra.mxu0 0.0
    %127 = vmatprep.subr.mxu0 0.0
    %128 = vmatpush1.msra.mxu0 0.0
    %129 = vmatprep.subr.mxu0 0.0
    %130 = vmatpush1.msra.mxu0 0.0
    %131 = vmatprep.subr.mxu0 0.0
    %132 = vmatpush1.msra.mxu0 0.0
    %133 = vmatprep.subr.mxu0 0.0
    %134 = vmatpush1.msra.mxu0 0.0
    %135 = vmatprep.subr.mxu0 0.0
    %136 = vmatpush1.msra.mxu0 0.0
    %137 = vmatprep.subr.mxu0 0.0
    %138 = vmatpush1.msra.mxu0 0.0
    %139 = vmatprep.subr.mxu0 0.0
    %140 = vmatpush1.msra.mxu0 0.0
    %141 = vmatprep.subr.mxu0 0.0
    %142 = vmatpush1.msra.mxu0 0.0
    %143 = vmatprep.mubr.f32.mxu0 0.0
    %144 = vmatmul.mubr.f32.gmra.mrb[0].mxu0 %v30
    %v145 = vpop.f32.mrb[0].mxu0
    %v146 = vadd.f32 0.0, %v145
    %v147 = vpop.f32.mrb[0].mxu0
    %148 = vmatprep.mubr.f32.mxu0 0.0
    %149 = vmatmul.mubr.f32.gmra.mrb[0].mxu0 %v31
    %v150 = vpop.f32.mrb[0].mxu0
    %v151 = vadd.f32 0.0, %v150
    %v152 = vpop.f32.mrb[0].mxu0
    %153 = vmatprep.mubr.f32.mxu0 0.0
    %154 = vmatmul.mubr.f32.gmra.mrb[0].mxu0 %v32
    %v155 = vpop.f32.mrb[0].mxu0
    %v156 = vadd.f32 0.0, %v155
    %v157 = vpop.f32.mrb[0].mxu0
    %158 = vmatprep.mubr.f32.mxu0 0.0
    %159 = vmatmul.mubr.f32.gmra.mrb[0].mxu0 %v33
    %v160 = vpop.f32.mrb[0].mxu0
    %v161 = vadd.f32 0.0, %v160
    %v162 = vpop.f32.mrb[0].mxu0
    %163 = vmatprep.mubr.f32.mxu0 0.0
    %164 = vmatmul.mubr.f32.gmra.mrb[0].mxu0 %v34
    %v165 = vpop.f32.mrb[0].mxu0
    %v166 = vadd.f32 0.0, %v165
    %v167 = vpop.f32.mrb[0].mxu0
    %168 = vmatprep.mubr.f32.mxu0 0.0
    %169 = vmatmul.mubr.f32.gmra.mrb[0].mxu0 %v35
    %v170 = vpop.f32.mrb[0].mxu0
    %v171 = vadd.f32 0.0, %v170
    %v172 = vpop.f32.mrb[0].mxu0
    %173 = vmatprep.mubr.f32.mxu0 0.0
    %174 = vmatmul.mubr.f32.gmra.mrb[0].mxu0 %v36
    %v175 = vpop.f32.mrb[0].mxu0
    %v176 = vadd.f32 0.0, %v175
    %v177 = vpop.f32.mrb[0].mxu0
    %178 = vmatprep.mubr.f32.mxu0 0.0
    %179 = vmatmul.mubr.f32.gmra.mrb[0].mxu0 %v37
    %v180 = vpop.f32.mrb[0].mxu0
    %v181 = vadd.f32 0.0, %v180
    %v182 = vpop.f32.mrb[0].mxu0
    %183 = vmatprep.mubr.f32.mxu0 0.0
    %184 = vmatmul.mubr.f32.gmra.mrb[0].mxu0 %v38
    %v185 = vpop.f32.mrb[0].mxu0
    %v186 = vadd.f32 0.0, %v185
    %v187 = vpop.f32.mrb[0].mxu0
    %188 = vmatprep.mubr.f32.mxu0 0.0
    %189 = vmatmul.mubr.f32.gmra.mrb[0].mxu0 %v39
    %v190 = vpop.f32.mrb[0].mxu0
    %v191 = vadd.f32 0.0, %v190
    %v192 = vpop.f32.mrb[0].mxu0
    %193 = vmatprep.mubr.f32.mxu0 0.0
    %194 = vmatmul.mubr.f32.gmra.mrb[0].mxu0 %v40
    %v195 = vpop.f32.mrb[0].mxu0
    %v196 = vadd.f32 0.0, %v195
    %v197 = vpop.f32.mrb[0].mxu0
    %198 = vmatprep.mubr.f32.mxu0 0.0
    %199 = vmatmul.mubr.f32.gmra.mrb[0].mxu0 %v41
    %v200 = vpop.f32.mrb[0].mxu0
    %v201 = vadd.f32 0.0, %v200
    %v202 = vpop.f32.mrb[0].mxu0
    %203 = vmatprep.mubr.f32.mxu0 0.0
    %204 = vmatmul.mubr.f32.gmra.mrb[0].mxu0 %v42
    %v205 = vpop.f32.mrb[0].mxu0
    %v206 = vadd.f32 0.0, %v205
    %v207 = vpop.f32.mrb[0].mxu0
    %208 = vmatprep.mubr.f32.mxu0 0.0
    %209 = vmatmul.mubr.f32.gmra.mrb[0].mxu0 %v43
    %v210 = vpop.f32.mrb[0].mxu0
    %v211 = vadd.f32 0.0, %v210
    %v212 = vpop.f32.mrb[0].mxu0
    %213 = vmatprep.mubr.f32.mxu0 0.0
    %214 = vmatmul.mubr.f32.gmra.mrb[0].mxu0 %v44
    %v215 = vpop.f32.mrb[0].mxu0
    %v216 = vadd.f32 0.0, %v215
    %v217 = vpop.f32.mrb[0].mxu0
    %218 = vmatprep.mubr.f32.mxu0 0.0
    %219 = vmatmul.mubr.f32.gmra.mrb[0].mxu0 %v45
    %v220 = vpop.f32.mrb[0].mxu0
    %v221 = vadd.f32 0.0, %v220
    %v222 = vpop.f32.mrb[0].mxu0
    %223 = vdwg.mxu0
    %s224 = scalar_lea.vmem [#allocation2], 128
    %225 = vst.msk [vmem:[%s224] sm:$0xff] %vm62, %v146
    %226 = vst.msk [vmem:[%s224 + $0x8] sm:$0xff] %vm62, %v151
    %227 = vst.msk [vmem:[%s224 + $0x10] sm:$0xff] %vm62, %v156
    %228 = vst.msk [vmem:[%s224 + $0x18] sm:$0xff] %vm62, %v161
    %229 = vst.msk [vmem:[%s224 + $0x20] sm:$0xff] %vm62, %v166
    %230 = vst.msk [vmem:[%s224 + $0x28] sm:$0xff] %vm62, %v171
    %231 = vst.msk [vmem:[%s224 + $0x30] sm:$0xff] %vm62, %v176
    %232 = vst.msk [vmem:[%s224 + $0x38] sm:$0xff] %vm62, %v181
    %233 = vst.msk [vmem:[%s224 + $0x40] sm:$0xff] %vm62, %v186
    %234 = vst.msk [vmem:[%s224 + $0x48] sm:$0xff] %vm62, %v191
    %235 = vst.msk [vmem:[%s224 + $0x50] sm:$0xff] %vm62, %v196
    %236 = vst.msk [vmem:[%s224 + $0x58] sm:$0xff] %vm62, %v201
    %237 = vst.msk [vmem:[%s224 + $0x60] sm:$0xff] %vm62, %v206
    %238 = vst.msk [vmem:[%s224 + $0x68] sm:$0xff] %vm62, %v211
    %239 = vst.msk [vmem:[%s224 + $0x70] sm:$0xff] %vm62, %v216
    %240 = vst.msk [vmem:[%s224 + $0x78] sm:$0xff] %vm62, %v221
    %241 = vmatprep.subr.mxu0 0.0
    %242 = vmatpush1.msra.mxu0 %v146
    %243 = vmatprep.subr.mxu0 0.0
    %244 = vmatpush1.msra.mxu0 %v151
    %245 = vmatprep.subr.mxu0 0.0
    %246 = vmatpush1.msra.mxu0 %v156
    %247 = vmatprep.subr.mxu0 0.0
    %248 = vmatpush1.msra.mxu0 %v161
    %249 = vmatprep.subr.mxu0 0.0
    %250 = vmatpush1.msra.mxu0 %v166
    %251 = vmatprep.subr.mxu0 0.0
    %252 = vmatpush1.msra.mxu0 %v171
    %253 = vmatprep.subr.mxu0 0.0
    %254 = vmatpush1.msra.mxu0 %v176
    %255 = vmatprep.subr.mxu0 0.0
    %256 = vmatpush1.msra.mxu0 %v181
    %257 = vmatprep.subr.mxu0 0.0
    %258 = vmatpush1.msra.mxu0 %v186
    %259 = vmatprep.subr.mxu0 0.0
    %260 = vmatpush1.msra.mxu0 %v191
    %261 = vmatprep.subr.mxu0 0.0
    %262 = vmatpush1.msra.mxu0 %v196
    %263 = vmatprep.subr.mxu0 0.0
    %264 = vmatpush1.msra.mxu0 %v201
    %265 = vmatprep.subr.mxu0 0.0
    %266 = vmatpush1.msra.mxu0 %v206
    %267 = vmatprep.subr.mxu0 0.0
    %268 = vmatpush1.msra.mxu0 %v211
    %269 = vmatprep.subr.mxu0 0.0
    %270 = vmatpush1.msra.mxu0 %v216
    %271 = vmatprep.subr.mxu0 0.0
    %272 = vmatpush1.msra.mxu0 %v221
    %273 = vmatprep.subr.mxu0 0.0
    %274 = vmatpush1.msra.mxu0 0.0
    %275 = vmatprep.subr.mxu0 0.0
    %276 = vmatpush1.msra.mxu0 0.0
    %277 = vmatprep.subr.mxu0 0.0
    %278 = vmatpush1.msra.mxu0 0.0
    %279 = vmatprep.subr.mxu0 0.0
    %280 = vmatpush1.msra.mxu0 0.0
    %281 = vmatprep.subr.mxu0 0.0
    %282 = vmatpush1.msra.mxu0 0.0
    %283 = vmatprep.subr.mxu0 0.0
    %284 = vmatpush1.msra.mxu0 0.0
    %285 = vmatprep.subr.mxu0 0.0
    %286 = vmatpush1.msra.mxu0 0.0
    %287 = vmatprep.subr.mxu0 0.0
    %288 = vmatpush1.msra.mxu0 0.0
    %289 = vmatprep.subr.mxu0 0.0
    %290 = vmatpush1.msra.mxu0 0.0
    %291 = vmatprep.subr.mxu0 0.0
    %292 = vmatpush1.msra.mxu0 0.0
    %293 = vmatprep.subr.mxu0 0.0
    %294 = vmatpush1.msra.mxu0 0.0
    %295 = vmatprep.subr.mxu0 0.0
    %296 = vmatpush1.msra.mxu0 0.0
    %297 = vmatprep.subr.mxu0 0.0
    %298 = vmatpush1.msra.mxu0 0.0
    %299 = vmatprep.subr.mxu0 0.0
    %300 = vmatpush1.msra.mxu0 0.0
    %301 = vmatprep.subr.mxu0 0.0
    %302 = vmatpush1.msra.mxu0 0.0
    %303 = vmatprep.subr.mxu0 0.0
    %304 = vmatpush1.msra.mxu0 0.0
    %305 = vmatprep.mubr.f32.mxu0 0.0
    %306 = vmatmul.mubr.f32.gmra.mrb[0].mxu0 %v30
    %v307 = vpop.f32.mrb[0].mxu0
    %v308 = vadd.f32 0.0, %v307
    %v309 = vpop.f32.mrb[0].mxu0
    %310 = vmatprep.mubr.f32.mxu0 0.0
    %311 = vmatmul.mubr.f32.gmra.mrb[0].mxu0 %v31
    %v312 = vpop.f32.mrb[0].mxu0
    %v313 = vadd.f32 0.0, %v312
    %v314 = vpop.f32.mrb[0].mxu0
    %315 = vmatprep.mubr.f32.mxu0 0.0
    %316 = vmatmul.mubr.f32.gmra.mrb[0].mxu0 %v32
    %v317 = vpop.f32.mrb[0].mxu0
    %v318 = vadd.f32 0.0, %v317
    %v319 = vpop.f32.mrb[0].mxu0
    %320 = vmatprep.mubr.f32.mxu0 0.0
    %321 = vmatmul.mubr.f32.gmra.mrb[0].mxu0 %v33
    %v322 = vpop.f32.mrb[0].mxu0
    %v323 = vadd.f32 0.0, %v322
    %v324 = vpop.f32.mrb[0].mxu0
    %325 = vmatprep.mubr.f32.mxu0 0.0
    %326 = vmatmul.mubr.f32.gmra.mrb[0].mxu0 %v34
    %v327 = vpop.f32.mrb[0].mxu0
    %v328 = vadd.f32 0.0, %v327
    %v329 = vpop.f32.mrb[0].mxu0
    %330 = vmatprep.mubr.f32.mxu0 0.0
    %331 = vmatmul.mubr.f32.gmra.mrb[0].mxu0 %v35
    %v332 = vpop.f32.mrb[0].mxu0
    %v333 = vadd.f32 0.0, %v332
    %v334 = vpop.f32.mrb[0].mxu0
    %335 = vmatprep.mubr.f32.mxu0 0.0
    %336 = vmatmul.mubr.f32.gmra.mrb[0].mxu0 %v36
    %v337 = vpop.f32.mrb[0].mxu0
    %v338 = vadd.f32 0.0, %v337
    %v339 = vpop.f32.mrb[0].mxu0
    %340 = vmatprep.mubr.f32.mxu0 0.0
    %341 = vmatmul.mubr.f32.gmra.mrb[0].mxu0 %v37
    %v342 = vpop.f32.mrb[0].mxu0
    %v343 = vadd.f32 0.0, %v342
    %v344 = vpop.f32.mrb[0].mxu0
    %345 = vmatprep.mubr.f32.mxu0 0.0
    %346 = vmatmul.mubr.f32.gmra.mrb[0].mxu0 %v38
    %v347 = vpop.f32.mrb[0].mxu0
    %v348 = vadd.f32 0.0, %v347
    %v349 = vpop.f32.mrb[0].mxu0
    %350 = vmatprep.mubr.f32.mxu0 0.0
    %351 = vmatmul.mubr.f32.gmra.mrb[0].mxu0 %v39
    %v352 = vpop.f32.mrb[0].mxu0
    %v353 = vadd.f32 0.0, %v352
    %v354 = vpop.f32.mrb[0].mxu0
    %355 = vmatprep.mubr.f32.mxu0 0.0
    %356 = vmatmul.mubr.f32.gmra.mrb[0].mxu0 %v40
    %v357 = vpop.f32.mrb[0].mxu0
    %v358 = vadd.f32 0.0, %v357
    %v359 = vpop.f32.mrb[0].mxu0
    %360 = vmatprep.mubr.f32.mxu0 0.0
    %361 = vmatmul.mubr.f32.gmra.mrb[0].mxu0 %v41
    %v362 = vpop.f32.mrb[0].mxu0
    %v363 = vadd.f32 0.0, %v362
    %v364 = vpop.f32.mrb[0].mxu0
    %365 = vmatprep.mubr.f32.mxu0 0.0
    %366 = vmatmul.mubr.f32.gmra.mrb[0].mxu0 %v42
    %v367 = vpop.f32.mrb[0].mxu0
    %v368 = vadd.f32 0.0, %v367
    %v369 = vpop.f32.mrb[0].mxu0
    %370 = vmatprep.mubr.f32.mxu0 0.0
    %371 = vmatmul.mubr.f32.gmra.mrb[0].mxu0 %v43
    %v372 = vpop.f32.mrb[0].mxu0
    %v373 = vadd.f32 0.0, %v372
    %v374 = vpop.f32.mrb[0].mxu0
    %375 = vmatprep.mubr.f32.mxu0 0.0
    %376 = vmatmul.mubr.f32.gmra.mrb[0].mxu0 %v44
    %v377 = vpop.f32.mrb[0].mxu0
    %v378 = vadd.f32 0.0, %v377
    %v379 = vpop.f32.mrb[0].mxu0
    %380 = vmatprep.mubr.f32.mxu0 0.0
    %381 = vmatmul.mubr.f32.gmra.mrb[0].mxu0 %v45
    %v382 = vpop.f32.mrb[0].mxu0
    %v383 = vadd.f32 0.0, %v382
    %v384 = vpop.f32.mrb[0].mxu0
    %385 = vdwg.mxu0
    %s386 = scalar_lea.vmem [#allocation2], 256
    %387 = vst.msk [vmem:[%s386] sm:$0xff] %vm62, %v308
    %388 = vst.msk [vmem:[%s386 + $0x8] sm:$0xff] %vm62, %v313
    %389 = vst.msk [vmem:[%s386 + $0x10] sm:$0xff] %vm62, %v318
    %390 = vst.msk [vmem:[%s386 + $0x18] sm:$0xff] %vm62, %v323
    %391 = vst.msk [vmem:[%s386 + $0x20] sm:$0xff] %vm62, %v328
    %392 = vst.msk [vmem:[%s386 + $0x28] sm:$0xff] %vm62, %v333
    %393 = vst.msk [vmem:[%s386 + $0x30] sm:$0xff] %vm62, %v338
    %394 = vst.msk [vmem:[%s386 + $0x38] sm:$0xff] %vm62, %v343
    %395 = vst.msk [vmem:[%s386 + $0x40] sm:$0xff] %vm62, %v348
    %396 = vst.msk [vmem:[%s386 + $0x48] sm:$0xff] %vm62, %v353
    %397 = vst.msk [vmem:[%s386 + $0x50] sm:$0xff] %vm62, %v358
    %398 = vst.msk [vmem:[%s386 + $0x58] sm:$0xff] %vm62, %v363
    %399 = vst.msk [vmem:[%s386 + $0x60] sm:$0xff] %vm62, %v368
    %400 = vst.msk [vmem:[%s386 + $0x68] sm:$0xff] %vm62, %v373
    %401 = vst.msk [vmem:[%s386 + $0x70] sm:$0xff] %vm62, %v378
    %402 = vst.msk [vmem:[%s386 + $0x78] sm:$0xff] %vm62, %v383
    %s403 = sld [smem:[#allocation5]]
    %s404 = sld [smem:[#allocation6]]
    %s405 = sadd.s32 %s404, 48
    %s406 = scalar_lea.vmem [#allocation2], %s403
    %v407 = vld [vmem:[%s406] sm:$0x1]
    %vm408 = vcmask 516096
    %409 = vst.msk [vmem:[#allocation3] sm:$0x1] %vm408, %v407
    %s410 = scalar_lea.vmem [#allocation2], %s405
    %v411 = vld [vmem:[%s410] sm:$0x1]
    %412 = vst.msk [vmem:[#allocation3 + $0x8] sm:$0x1] %vm408, %v411
    %s413 = sld [smem:[#allocation5 + $0x1]]
    %s414 = sld [smem:[#allocation6 + $0x1]]
    %s415 = sadd.s32 %s414, 48
    %s416 = scalar_lea.vmem [#allocation2], %s413
    %v417 = vld [vmem:[%s416] sm:$0x1]
    %418 = vst.msk [vmem:[#allocation3 + $0x1] sm:$0x1] %vm408, %v417
    %s419 = scalar_lea.vmem [#allocation2], %s415
    %v420 = vld [vmem:[%s419] sm:$0x1]
    %421 = vst.msk [vmem:[#allocation3 + $0x9] sm:$0x1] %vm408, %v420
    %s422 = sld [smem:[#allocation5 + $0x2]]
    %s423 = sld [smem:[#allocation6 + $0x2]]
    %s424 = sadd.s32 %s423, 48
    %s425 = scalar_lea.vmem [#allocation2], %s422
    %v426 = vld [vmem:[%s425] sm:$0x1]
    %427 = vst.msk [vmem:[#allocation3 + $0x2] sm:$0x1] %vm408, %v426
    %s428 = scalar_lea.vmem [#allocation2], %s424
    %v429 = vld [vmem:[%s428] sm:$0x1]
    %430 = vst.msk [vmem:[#allocation3 + $0xa] sm:$0x1] %vm408, %v429
    %s431 = sld [smem:[#allocation5 + $0x3]]
    %s432 = sld [smem:[#allocation6 + $0x3]]
    %s433 = sadd.s32 %s432, 48
    %s434 = scalar_lea.vmem [#allocation2], %s431
    %v435 = vld [vmem:[%s434] sm:$0x1]
    %436 = vst.msk [vmem:[#allocation3 + $0x3] sm:$0x1] %vm408, %v435
    %s437 = scalar_lea.vmem [#allocation2], %s433
    %v438 = vld [vmem:[%s437] sm:$0x1]
    %439 = vst.msk [vmem:[#allocation3 + $0xb] sm:$0x1] %vm408, %v438
    %s440 = sld [smem:[#allocation5 + $0x4]]
    %s441 = sld [smem:[#allocation6 + $0x4]]
    %s442 = sadd.s32 %s441, 48
    %s443 = scalar_lea.vmem [#allocation2], %s440
    %v444 = vld [vmem:[%s443] sm:$0x1]
    %445 = vst.msk [vmem:[#allocation3 + $0x4] sm:$0x1] %vm408, %v444
    %s446 = scalar_lea.vmem [#allocation2], %s442
    %v447 = vld [vmem:[%s446] sm:$0x1]
    %448 = vst.msk [vmem:[#allocation3 + $0xc] sm:$0x1] %vm408, %v447
    %s449 = sld [smem:[#allocation5 + $0x5]]
    %s450 = sld [smem:[#allocation6 + $0x5]]
    %s451 = sadd.s32 %s450, 48
    %s452 = scalar_lea.vmem [#allocation2], %s449
    %v453 = vld [vmem:[%s452] sm:$0x1]
    %454 = vst.msk [vmem:[#allocation3 + $0x5] sm:$0x1] %vm408, %v453
    %s455 = scalar_lea.vmem [#allocation2], %s451
    %v456 = vld [vmem:[%s455] sm:$0x1]
    %457 = vst.msk [vmem:[#allocation3 + $0xd] sm:$0x1] %vm408, %v456
    %s458 = sld [smem:[#allocation5 + $0x6]]
    %s459 = sld [smem:[#allocation6 + $0x6]]
    %s460 = sadd.s32 %s459, 48
    %s461 = scalar_lea.vmem [#allocation2], %s458
    %v462 = vld [vmem:[%s461] sm:$0x1]
    %463 = vst.msk [vmem:[#allocation3 + $0x6] sm:$0x1] %vm408, %v462
    %s464 = scalar_lea.vmem [#allocation2], %s460
    %v465 = vld [vmem:[%s464] sm:$0x1]
    %466 = vst.msk [vmem:[#allocation3 + $0xe] sm:$0x1] %vm408, %v465
    %s467 = sld [smem:[#allocation5 + $0x7]]
    %s468 = sld [smem:[#allocation6 + $0x7]]
    %s469 = sadd.s32 %s468, 48
    %s470 = scalar_lea.vmem [#allocation2], %s467
    %v471 = vld [vmem:[%s470] sm:$0x1]
    %472 = vst.msk [vmem:[#allocation3 + $0x7] sm:$0x1] %vm408, %v471
    %s473 = scalar_lea.vmem [#allocation2], %s469
    %v474 = vld [vmem:[%s473] sm:$0x1]
    %475 = vst.msk [vmem:[#allocation3 + $0xf] sm:$0x1] %vm408, %v474
    %s476 = sld [smem:[#allocation5]]
    %s477 = sld [smem:[#allocation6]]
    %s478 = sadd.s32 %s477, 48
    %s479 = sadd.s32 %s476, 128
    %s480 = scalar_lea.vmem [#allocation2], %s479
    %v481 = vld [vmem:[%s480] sm:$0x1]
    %s482 = scalar_lea.vmem [#allocation3], 16
    %483 = vst.msk [vmem:[%s482] sm:$0x1] %vm408, %v481
    %s484 = sadd.s32 %s478, 128
    %s485 = scalar_lea.vmem [#allocation2], %s484
    %v486 = vld [vmem:[%s485] sm:$0x1]
    %487 = vst.msk [vmem:[%s482 + $0x8] sm:$0x1] %vm408, %v486
    %s488 = sld [smem:[#allocation5 + $0x1]]
    %s489 = sld [smem:[#allocation6 + $0x1]]
    %s490 = sadd.s32 %s489, 48
    %s491 = sadd.s32 %s488, 128
    %s492 = scalar_lea.vmem [#allocation2], %s491
    %v493 = vld [vmem:[%s492] sm:$0x1]
    %494 = vst.msk [vmem:[%s482 + $0x1] sm:$0x1] %vm408, %v493
    %s495 = sadd.s32 %s490, 128
    %s496 = scalar_lea.vmem [#allocation2], %s495
    %v497 = vld [vmem:[%s496] sm:$0x1]
    %498 = vst.msk [vmem:[%s482 + $0x9] sm:$0x1] %vm408, %v497
    %s499 = sld [smem:[#allocation5 + $0x2]]
    %s500 = sld [smem:[#allocation6 + $0x2]]
    %s501 = sadd.s32 %s500, 48
    %s502 = sadd.s32 %s499, 128
    %s503 = scalar_lea.vmem [#allocation2], %s502
    %v504 = vld [vmem:[%s503] sm:$0x1]
    %505 = vst.msk [vmem:[%s482 + $0x2] sm:$0x1] %vm408, %v504
    %s506 = sadd.s32 %s501, 128
    %s507 = scalar_lea.vmem [#allocation2], %s506
    %v508 = vld [vmem:[%s507] sm:$0x1]
    %509 = vst.msk [vmem:[%s482 + $0xa] sm:$0x1] %vm408, %v508
    %s510 = sld [smem:[#allocation5 + $0x3]]
    %s511 = sld [smem:[#allocation6 + $0x3]]
    %s512 = sadd.s32 %s511, 48
    %s513 = sadd.s32 %s510, 128
    %s514 = scalar_lea.vmem [#allocation2], %s513
    %v515 = vld [vmem:[%s514] sm:$0x1]
    %516 = vst.msk [vmem:[%s482 + $0x3] sm:$0x1] %vm408, %v515
    %s517 = sadd.s32 %s512, 128
    %s518 = scalar_lea.vmem [#allocation2], %s517
    %v519 = vld [vmem:[%s518] sm:$0x1]
    %520 = vst.msk [vmem:[%s482 + $0xb] sm:$0x1] %vm408, %v519
    %s521 = sld [smem:[#allocation5 + $0x4]]
    %s522 = sld [smem:[#allocation6 + $0x4]]
    %s523 = sadd.s32 %s522, 48
    %s524 = sadd.s32 %s521, 128
    %s525 = scalar_lea.vmem [#allocation2], %s524
    %v526 = vld [vmem:[%s525] sm:$0x1]
    %527 = vst.msk [vmem:[%s482 + $0x4] sm:$0x1] %vm408, %v526
    %s528 = sadd.s32 %s523, 128
    %s529 = scalar_lea.vmem [#allocation2], %s528
    %v530 = vld [vmem:[%s529] sm:$0x1]
    %531 = vst.msk [vmem:[%s482 + $0xc] sm:$0x1] %vm408, %v530
    %s532 = sld [smem:[#allocation5 + $0x5]]
    %s533 = sld [smem:[#allocation6 + $0x5]]
    %s534 = sadd.s32 %s533, 48
    %s535 = sadd.s32 %s532, 128
    %s536 = scalar_lea.vmem [#allocation2], %s535
    %v537 = vld [vmem:[%s536] sm:$0x1]
    %538 = vst.msk [vmem:[%s482 + $0x5] sm:$0x1] %vm408, %v537
    %s539 = sadd.s32 %s534, 128
    %s540 = scalar_lea.vmem [#allocation2], %s539
    %v541 = vld [vmem:[%s540] sm:$0x1]
    %542 = vst.msk [vmem:[%s482 + $0xd] sm:$0x1] %vm408, %v541
    %s543 = sld [smem:[#allocation5 + $0x6]]
    %s544 = sld [smem:[#allocation6 + $0x6]]
    %s545 = sadd.s32 %s544, 48
    %s546 = sadd.s32 %s543, 128
    %s547 = scalar_lea.vmem [#allocation2], %s546
    %v548 = vld [vmem:[%s547] sm:$0x1]
    %549 = vst.msk [vmem:[%s482 + $0x6] sm:$0x1] %vm408, %v548
    %s550 = sadd.s32 %s545, 128
    %s551 = scalar_lea.vmem [#allocation2], %s550
    %v552 = vld [vmem:[%s551] sm:$0x1]
    %553 = vst.msk [vmem:[%s482 + $0xe] sm:$0x1] %vm408, %v552
    %s554 = sld [smem:[#allocation5 + $0x7]]
    %s555 = sld [smem:[#allocation6 + $0x7]]
    %s556 = sadd.s32 %s555, 48
    %s557 = sadd.s32 %s554, 128
    %s558 = scalar_lea.vmem [#allocation2], %s557
    %v559 = vld [vmem:[%s558] sm:$0x1]
    %560 = vst.msk [vmem:[%s482 + $0x7] sm:$0x1] %vm408, %v559
    %s561 = sadd.s32 %s556, 128
    %s562 = scalar_lea.vmem [#allocation2], %s561
    %v563 = vld [vmem:[%s562] sm:$0x1]
    %564 = vst.msk [vmem:[%s482 + $0xf] sm:$0x1] %vm408, %v563
    %s565 = sld [smem:[#allocation5]]
    %s566 = sld [smem:[#allocation6]]
    %s567 = sadd.s32 %s566, 48
    %s568 = sadd.s32 %s565, 256
    %s569 = scalar_lea.vmem [#allocation2], %s568
    %v570 = vld [vmem:[%s569] sm:$0x1]
    %s571 = scalar_lea.vmem [#allocation3], 32
    %572 = vst.msk [vmem:[%s571] sm:$0x1] %vm408, %v570
    %s573 = sadd.s32 %s567, 256
    %s574 = scalar_lea.vmem [#allocation2], %s573
    %v575 = vld [vmem:[%s574] sm:$0x1]
    %576 = vst.msk [vmem:[%s571 + $0x8] sm:$0x1] %vm408, %v575
    %s577 = sld [smem:[#allocation5 + $0x1]]
    %s578 = sld [smem:[#allocation6 + $0x1]]
    %s579 = sadd.s32 %s578, 48
    %s580 = sadd.s32 %s577, 256
    %s581 = scalar_lea.vmem [#allocation2], %s580
    %v582 = vld [vmem:[%s581] sm:$0x1]
    %583 = vst.msk [vmem:[%s571 + $0x1] sm:$0x1] %vm408, %v582
    %s584 = sadd.s32 %s579, 256
    %s585 = scalar_lea.vmem [#allocation2], %s584
    %v586 = vld [vmem:[%s585] sm:$0x1]
    %587 = vst.msk [vmem:[%s571 + $0x9] sm:$0x1] %vm408, %v586
    %s588 = sld [smem:[#allocation5 + $0x2]]
    %s589 = sld [smem:[#allocation6 + $0x2]]
    %s590 = sadd.s32 %s589, 48
    %s591 = sadd.s32 %s588, 256
    %s592 = scalar_lea.vmem [#allocation2], %s591
    %v593 = vld [vmem:[%s592] sm:$0x1]
    %594 = vst.msk [vmem:[%s571 + $0x2] sm:$0x1] %vm408, %v593
    %s595 = sadd.s32 %s590, 256
    %s596 = scalar_lea.vmem [#allocation2], %s595
    %v597 = vld [vmem:[%s596] sm:$0x1]
    %598 = vst.msk [vmem:[%s571 + $0xa] sm:$0x1] %vm408, %v597
    %s599 = sld [smem:[#allocation5 + $0x3]]
    %s600 = sld [smem:[#allocation6 + $0x3]]
    %s601 = sadd.s32 %s600, 48
    %s602 = sadd.s32 %s599, 256
    %s603 = scalar_lea.vmem [#allocation2], %s602
    %v604 = vld [vmem:[%s603] sm:$0x1]
    %605 = vst.msk [vmem:[%s571 + $0x3] sm:$0x1] %vm408, %v604
    %s606 = sadd.s32 %s601, 256
    %s607 = scalar_lea.vmem [#allocation2], %s606
    %v608 = vld [vmem:[%s607] sm:$0x1]
    %609 = vst.msk [vmem:[%s571 + $0xb] sm:$0x1] %vm408, %v608
    %s610 = sld [smem:[#allocation5 + $0x4]]
    %s611 = sld [smem:[#allocation6 + $0x4]]
    %s612 = sadd.s32 %s611, 48
    %s613 = sadd.s32 %s610, 256
    %s614 = scalar_lea.vmem [#allocation2], %s613
    %v615 = vld [vmem:[%s614] sm:$0x1]
    %616 = vst.msk [vmem:[%s571 + $0x4] sm:$0x1] %vm408, %v615
    %s617 = sadd.s32 %s612, 256
    %s618 = scalar_lea.vmem [#allocation2], %s617
    %v619 = vld [vmem:[%s618] sm:$0x1]
    %620 = vst.msk [vmem:[%s571 + $0xc] sm:$0x1] %vm408, %v619
    %s621 = sld [smem:[#allocation5 + $0x5]]
    %s622 = sld [smem:[#allocation6 + $0x5]]
    %s623 = sadd.s32 %s622, 48
    %s624 = sadd.s32 %s621, 256
    %s625 = scalar_lea.vmem [#allocation2], %s624
    %v626 = vld [vmem:[%s625] sm:$0x1]
    %627 = vst.msk [vmem:[%s571 + $0x5] sm:$0x1] %vm408, %v626
    %s628 = sadd.s32 %s623, 256
    %s629 = scalar_lea.vmem [#allocation2], %s628
    %v630 = vld [vmem:[%s629] sm:$0x1]
    %631 = vst.msk [vmem:[%s571 + $0xd] sm:$0x1] %vm408, %v630
    %s632 = sld [smem:[#allocation5 + $0x6]]
    %s633 = sld [smem:[#allocation6 + $0x6]]
    %s634 = sadd.s32 %s633, 48
    %s635 = sadd.s32 %s632, 256
    %s636 = scalar_lea.vmem [#allocation2], %s635
    %v637 = vld [vmem:[%s636] sm:$0x1]
    %638 = vst.msk [vmem:[%s571 + $0x6] sm:$0x1] %vm408, %v637
    %s639 = sadd.s32 %s634, 256
    %s640 = scalar_lea.vmem [#allocation2], %s639
    %v641 = vld [vmem:[%s640] sm:$0x1]
    %642 = vst.msk [vmem:[%s571 + $0xe] sm:$0x1] %vm408, %v641
    %s643 = sld [smem:[#allocation5 + $0x7]]
    %s644 = sld [smem:[#allocation6 + $0x7]]
    %s645 = sadd.s32 %s644, 48
    %s646 = sadd.s32 %s643, 256
    %s647 = scalar_lea.vmem [#allocation2], %s646
    %v648 = vld [vmem:[%s647] sm:$0x1]
    %649 = vst.msk [vmem:[%s571 + $0x7] sm:$0x1] %vm408, %v648
    %s650 = sadd.s32 %s645, 256
    %s651 = scalar_lea.vmem [#allocation2], %s650
    %v652 = vld [vmem:[%s651] sm:$0x1]
    %653 = vst.msk [vmem:[%s571 + $0xf] sm:$0x1] %vm408, %v652
    %v654 = vld [vmem:[%s5] sm:$0x1]
    %v656 = vlaneseq
    %v657 = vshrl.u32 %v656, 7
    %v658 = vsub.s32 0, %v657
    %v659 = vrot.slane %v654, %v658
    %v661 = vld [vmem:[#allocation3] sm:$0xff]
    %v662 = vld [vmem:[#allocation3 + $0x8] sm:$0xff]
    %v663 = vld [vmem:[%s4] sm:$0xff]
    %v664 = vld [vmem:[%s4 + $0x8] sm:$0xff]
    %v665 = vld [vmem:[%s4 + $0x10] sm:$0xff]
    %v666 = vld [vmem:[%s4 + $0x18] sm:$0xff]
    %v667 = vld [vmem:[%s4 + $0x20] sm:$0xff]
    %v668 = vld [vmem:[%s4 + $0x28] sm:$0xff]
    %v669 = vld [vmem:[%s4 + $0x30] sm:$0xff]
    %v670 = vld [vmem:[%s4 + $0x38] sm:$0xff]
    %v672 = vsel %vm62, %v661, 0
    %v675 = vsel %vm62, %v662, 0
    %677 = vmatprep.subr.mxu0 0.0
    %678 = vmatpush1.msra.mxu0 %v663
    %679 = vmatprep.subr.mxu0 0.0
    %680 = vmatpush1.msra.mxu0 %v664
    %681 = vmatprep.subr.mxu0 0.0
    %682 = vmatpush1.msra.mxu0 %v665
    %683 = vmatprep.subr.mxu0 0.0
    %684 = vmatpush1.msra.mxu0 %v666
    %685 = vmatprep.subr.mxu0 0.0
    %686 = vmatpush1.msra.mxu0 %v667
    %687 = vmatprep.subr.mxu0 0.0
    %688 = vmatpush1.msra.mxu0 %v668
    %689 = vmatprep.subr.mxu0 0.0
    %690 = vmatpush1.msra.mxu0 %v669
    %691 = vmatprep.subr.mxu0 0.0
    %692 = vmatpush1.msra.mxu0 %v670
    %693 = vmatprep.subr.mxu0 0.0
    %694 = vmatpush1.msra.mxu0 0.0
    %695 = vmatprep.subr.mxu0 0.0
    %696 = vmatpush1.msra.mxu0 0.0
    %697 = vmatprep.subr.mxu0 0.0
    %698 = vmatpush1.msra.mxu0 0.0
    %699 = vmatprep.subr.mxu0 0.0
    %700 = vmatpush1.msra.mxu0 0.0
    %701 = vmatprep.subr.mxu0 0.0
    %702 = vmatpush1.msra.mxu0 0.0
    %703 = vmatprep.subr.mxu0 0.0
    %704 = vmatpush1.msra.mxu0 0.0
    %705 = vmatprep.subr.mxu0 0.0
    %706 = vmatpush1.msra.mxu0 0.0
    %707 = vmatprep.subr.mxu0 0.0
    %708 = vmatpush1.msra.mxu0 0.0
    %709 = vmatprep.subr.mxu0 0.0
    %710 = vmatpush1.msra.mxu0 0.0
    %711 = vmatprep.subr.mxu0 0.0
    %712 = vmatpush1.msra.mxu0 0.0
    %713 = vmatprep.subr.mxu0 0.0
    %714 = vmatpush1.msra.mxu0 0.0
    %715 = vmatprep.subr.mxu0 0.0
    %716 = vmatpush1.msra.mxu0 0.0
    %717 = vmatprep.subr.mxu0 0.0
    %718 = vmatpush1.msra.mxu0 0.0
    %719 = vmatprep.subr.mxu0 0.0
    %720 = vmatpush1.msra.mxu0 0.0
    %721 = vmatprep.subr.mxu0 0.0
    %722 = vmatpush1.msra.mxu0 0.0
    %723 = vmatprep.subr.mxu0 0.0
    %724 = vmatpush1.msra.mxu0 0.0
    %725 = vmatprep.subr.mxu0 0.0
    %726 = vmatpush1.msra.mxu0 0.0
    %727 = vmatprep.subr.mxu0 0.0
    %728 = vmatpush1.msra.mxu0 0.0
    %729 = vmatprep.subr.mxu0 0.0
    %730 = vmatpush1.msra.mxu0 0.0
    %731 = vmatprep.subr.mxu0 0.0
    %732 = vmatpush1.msra.mxu0 0.0
    %733 = vmatprep.subr.mxu0 0.0
    %734 = vmatpush1.msra.mxu0 0.0
    %735 = vmatprep.subr.mxu0 0.0
    %736 = vmatpush1.msra.mxu0 0.0
    %737 = vmatprep.subr.mxu0 0.0
    %738 = vmatpush1.msra.mxu0 0.0
    %739 = vmatprep.subr.mxu0 0.0
    %740 = vmatpush1.msra.mxu0 0.0
    %741 = vmatprep.mubr.f32.mxu0 0.0
    %742 = vmatmul.mubr.f32.gmra.mrb[0].mxu0 %v672
    %v743 = vpop.f32.mrb[0].mxu0
    %v744 = vadd.f32 0.0, %v743
    %v745 = vpop.f32.mrb[0].mxu0
    %746 = vmatprep.mubr.f32.mxu0 0.0
    %747 = vmatmul.mubr.f32.gmra.mrb[0].mxu0 %v675
    %v748 = vpop.f32.mrb[0].mxu0
    %v749 = vadd.f32 0.0, %v748
    %v750 = vpop.f32.mrb[0].mxu0
    %751 = vdwg.mxu0
    %v752 = vadd.f32 %v659, %v744
    %v753 = vadd.f32 %v659, %v749
    %v754 = vld [vmem:[%s482] sm:$0xff]
    %v755 = vld [vmem:[%s482 + $0x8] sm:$0xff]
    %v756 = vld [vmem:[%s4 + $0x40] sm:$0xff]
    %v757 = vld [vmem:[%s4 + $0x48] sm:$0xff]
    %v758 = vld [vmem:[%s4 + $0x50] sm:$0xff]
    %v759 = vld [vmem:[%s4 + $0x58] sm:$0xff]
    %v760 = vld [vmem:[%s4 + $0x60] sm:$0xff]
    %v761 = vld [vmem:[%s4 + $0x68] sm:$0xff]
    %v762 = vld [vmem:[%s4 + $0x70] sm:$0xff]
    %v763 = vld [vmem:[%s4 + $0x78] sm:$0xff]
    %v765 = vsel %vm62, %v754, 0
    %v768 = vsel %vm62, %v755, 0
    %770 = vmatprep.subr.mxu0 0.0
    %771 = vmatpush1.msra.mxu0 %v756
    %772 = vmatprep.subr.mxu0 0.0
    %773 = vmatpush1.msra.mxu0 %v757
    %774 = vmatprep.subr.mxu0 0.0
    %775 = vmatpush1.msra.mxu0 %v758
    %776 = vmatprep.subr.mxu0 0.0
    %777 = vmatpush1.msra.mxu0 %v759
    %778 = vmatprep.subr.mxu0 0.0
    %779 = vmatpush1.msra.mxu0 %v760
    %780 = vmatprep.subr.mxu0 0.0
    %781 = vmatpush1.msra.mxu0 %v761
    %782 = vmatprep.subr.mxu0 0.0
    %783 = vmatpush1.msra.mxu0 %v762
    %784 = vmatprep.subr.mxu0 0.0
    %785 = vmatpush1.msra.mxu0 %v763
    %786 = vmatprep.subr.mxu0 0.0
    %787 = vmatpush1.msra.mxu0 0.0
    %788 = vmatprep.subr.mxu0 0.0
    %789 = vmatpush1.msra.mxu0 0.0
    %790 = vmatprep.subr.mxu0 0.0
    %791 = vmatpush1.msra.mxu0 0.0
    %792 = vmatprep.subr.mxu0 0.0
    %793 = vmatpush1.msra.mxu0 0.0
    %794 = vmatprep.subr.mxu0 0.0
    %795 = vmatpush1.msra.mxu0 0.0
    %796 = vmatprep.subr.mxu0 0.0
    %797 = vmatpush1.msra.mxu0 0.0
    %798 = vmatprep.subr.mxu0 0.0
    %799 = vmatpush1.msra.mxu0 0.0
    %800 = vmatprep.subr.mxu0 0.0
    %801 = vmatpush1.msra.mxu0 0.0
    %802 = vmatprep.subr.mxu0 0.0
    %803 = vmatpush1.msra.mxu0 0.0
    %804 = vmatprep.subr.mxu0 0.0
    %805 = vmatpush1.msra.mxu0 0.0
    %806 = vmatprep.subr.mxu0 0.0
    %807 = vmatpush1.msra.mxu0 0.0
    %808 = vmatprep.subr.mxu0 0.0
    %809 = vmatpush1.msra.mxu0 0.0
    %810 = vmatprep.subr.mxu0 0.0
    %811 = vmatpush1.msra.mxu0 0.0
    %812 = vmatprep.subr.mxu0 0.0
    %813 = vmatpush1.msra.mxu0 0.0
    %814 = vmatprep.subr.mxu0 0.0
    %815 = vmatpush1.msra.mxu0 0.0
    %816 = vmatprep.subr.mxu0 0.0
    %817 = vmatpush1.msra.mxu0 0.0
    %818 = vmatprep.subr.mxu0 0.0
    %819 = vmatpush1.msra.mxu0 0.0
    %820 = vmatprep.subr.mxu0 0.0
    %821 = vmatpush1.msra.mxu0 0.0
    %822 = vmatprep.subr.mxu0 0.0
    %823 = vmatpush1.msra.mxu0 0.0
    %824 = vmatprep.subr.mxu0 0.0
    %825 = vmatpush1.msra.mxu0 0.0
    %826 = vmatprep.subr.mxu0 0.0
    %827 = vmatpush1.msra.mxu0 0.0
    %828 = vmatprep.subr.mxu0 0.0
    %829 = vmatpush1.msra.mxu0 0.0
    %830 = vmatprep.subr.mxu0 0.0
    %831 = vmatpush1.msra.mxu0 0.0
    %832 = vmatprep.subr.mxu0 0.0
    %833 = vmatpush1.msra.mxu0 0.0
    %834 = vmatprep.mubr.f32.mxu0 0.0
    %835 = vmatmul.mubr.f32.gmra.mrb[0].mxu0 %v765
    %v836 = vpop.f32.mrb[0].mxu0
    %v837 = vadd.f32 0.0, %v836
    %v838 = vpop.f32.mrb[0].mxu0
    %839 = vmatprep.mubr.f32.mxu0 0.0
    %840 = vmatmul.mubr.f32.gmra.mrb[0].mxu0 %v768
    %v841 = vpop.f32.mrb[0].mxu0
    %v842 = vadd.f32 0.0, %v841
    %v843 = vpop.f32.mrb[0].mxu0
    %844 = vdwg.mxu0
    %v845 = vadd.f32 %v752, %v837
    %v846 = vadd.f32 %v753, %v842
    %v847 = vld [vmem:[%s571] sm:$0xff]
    %v848 = vld [vmem:[%s571 + $0x8] sm:$0xff]
    %v849 = vld [vmem:[%s4 + $0x80] sm:$0xff]
    %v850 = vld [vmem:[%s4 + $0x88] sm:$0xff]
    %v851 = vld [vmem:[%s4 + $0x90] sm:$0xff]
    %v852 = vld [vmem:[%s4 + $0x98] sm:$0xff]
    %v853 = vld [vmem:[%s4 + $0xa0] sm:$0xff]
    %v854 = vld [vmem:[%s4 + $0xa8] sm:$0xff]
    %v855 = vld [vmem:[%s4 + $0xb0] sm:$0xff]
    %v856 = vld [vmem:[%s4 + $0xb8] sm:$0xff]
    %v858 = vsel %vm62, %v847, 0
    %v861 = vsel %vm62, %v848, 0
    %863 = vmatprep.subr.mxu0 0.0
    %864 = vmatpush1.msra.mxu0 %v849
    %865 = vmatprep.subr.mxu0 0.0
    %866 = vmatpush1.msra.mxu0 %v850
    %867 = vmatprep.subr.mxu0 0.0
    %868 = vmatpush1.msra.mxu0 %v851
    %869 = vmatprep.subr.mxu0 0.0
    %870 = vmatpush1.msra.mxu0 %v852
    %871 = vmatprep.subr.mxu0 0.0
    %872 = vmatpush1.msra.mxu0 %v853
    %873 = vmatprep.subr.mxu0 0.0
    %874 = vmatpush1.msra.mxu0 %v854
    %875 = vmatprep.subr.mxu0 0.0
    %876 = vmatpush1.msra.mxu0 %v855
    %877 = vmatprep.subr.mxu0 0.0
    %878 = vmatpush1.msra.mxu0 %v856
    %879 = vmatprep.subr.mxu0 0.0
    %880 = vmatpush1.msra.mxu0 0.0
    %881 = vmatprep.subr.mxu0 0.0
    %882 = vmatpush1.msra.mxu0 0.0
    %883 = vmatprep.subr.mxu0 0.0
    %884 = vmatpush1.msra.mxu0 0.0
    %885 = vmatprep.subr.mxu0 0.0
    %886 = vmatpush1.msra.mxu0 0.0
    %887 = vmatprep.subr.mxu0 0.0
    %888 = vmatpush1.msra.mxu0 0.0
    %889 = vmatprep.subr.mxu0 0.0
    %890 = vmatpush1.msra.mxu0 0.0
    %891 = vmatprep.subr.mxu0 0.0
    %892 = vmatpush1.msra.mxu0 0.0
    %893 = vmatprep.subr.mxu0 0.0
    %894 = vmatpush1.msra.mxu0 0.0
    %895 = vmatprep.subr.mxu0 0.0
    %896 = vmatpush1.msra.mxu0 0.0
    %897 = vmatprep.subr.mxu0 0.0
    %898 = vmatpush1.msra.mxu0 0.0
    %899 = vmatprep.subr.mxu0 0.0
    %900 = vmatpush1.msra.mxu0 0.0
    %901 = vmatprep.subr.mxu0 0.0
    %902 = vmatpush1.msra.mxu0 0.0
    %903 = vmatprep.subr.mxu0 0.0
    %904 = vmatpush1.msra.mxu0 0.0
    %905 = vmatprep.subr.mxu0 0.0
    %906 = vmatpush1.msra.mxu0 0.0
    %907 = vmatprep.subr.mxu0 0.0
    %908 = vmatpush1.msra.mxu0 0.0
    %909 = vmatprep.subr.mxu0 0.0
    %910 = vmatpush1.msra.mxu0 0.0
    %911 = vmatprep.subr.mxu0 0.0
    %912 = vmatpush1.msra.mxu0 0.0
    %913 = vmatprep.subr.mxu0 0.0
    %914 = vmatpush1.msra.mxu0 0.0
    %915 = vmatprep.subr.mxu0 0.0
    %916 = vmatpush1.msra.mxu0 0.0
    %917 = vmatprep.subr.mxu0 0.0
    %918 = vmatpush1.msra.mxu0 0.0
    %919 = vmatprep.subr.mxu0 0.0
    %920 = vmatpush1.msra.mxu0 0.0
    %921 = vmatprep.subr.mxu0 0.0
    %922 = vmatpush1.msra.mxu0 0.0
    %923 = vmatprep.subr.mxu0 0.0
    %924 = vmatpush1.msra.mxu0 0.0
    %925 = vmatprep.subr.mxu0 0.0
    %926 = vmatpush1.msra.mxu0 0.0
    %927 = vmatprep.mubr.f32.mxu0 0.0
    %928 = vmatmul.mubr.f32.gmra.mrb[0].mxu0 %v858
    %v929 = vpop.f32.mrb[0].mxu0
    %v930 = vadd.f32 0.0, %v929
    %v931 = vpop.f32.mrb[0].mxu0
    %932 = vmatprep.mubr.f32.mxu0 0.0
    %933 = vmatmul.mubr.f32.gmra.mrb[0].mxu0 %v861
    %v934 = vpop.f32.mrb[0].mxu0
    %v935 = vadd.f32 0.0, %v934
    %v936 = vpop.f32.mrb[0].mxu0
    %937 = vdwg.mxu0
    %v938 = vadd.f32 %v845, %v930
    %v939 = vadd.f32 %v846, %v935
    %v940 = vmul.f32 %v938, %v939
    %v941 = vsel %vm62, %v940, 0.0
    %942 = vadd.xlane.f32.xlu0 %v941
    %v943 = vpop.xlane.xlu0 %942
    %944 = vst [vmem:[#allocation7] sm:$0xff] %v943
    // Predicated region
    $region18: #{tpu_custom_call.1} parent=1 // pred_check
      _
    $region19: #{tpu_custom_call.1} parent=1 // pred_check_branch
      %946 = sbr.rel (0) target = $region21
    $region20: #{tpu_custom_call.1} parent=1 // pred_region
      %s948 = ssub.s32 128, 128
      %949 = vsyncadd [#allocation8], %s948
      %s951 = sshll.u32 [#allocation7], 4
      %s952 = int_to_ptr.vmem [resolvable:$true] %s951
      %954 = dma.vmem_to_hbm [thread:$0]  %s952, 128, %s6, [#allocation8]
    $region21: #{tpu_custom_call.1} parent=1 // pred_fallthru
      _
    // Predicated region
    $region22: #{tpu_custom_call.1} parent=1 // pred_check
      _
    $region23: #{tpu_custom_call.1} parent=1 // pred_check_branch
      %956 = sbr.rel (0) target = $region25
    $region24: #{tpu_custom_call.1} parent=1 // pred_region
      %957 = dma.done [#allocation8], 128
    $region25: #{tpu_custom_call.1} parent=1 // pred_fallthru
      _
    %958 = vsyncpa [#allocation8], 1

</llo_original>
